<compile_context>
chip_gen: v5e
topology: v5e:2x2
jax: 0.10.0
libtpu: 0.0.40
codegen_flags: <defaults>
</compile_context>

<pallas_src>
import jax
import jax.numpy as jnp
from jax import lax
from jax.experimental import pallas as pl
from jax.experimental.pallas import tpu as pltpu

# ----------------------------- hyper-parameters ------------------------------
INPUT_SIZE = 4          # input_size
NUM_LAYERS = 2          # num_layers
NHEAD = 4               # nhead
D_MODEL = 32            # "dim_feedforward" ctor arg == d_model of the encoder
FFN_HIDDEN = 2048       # nn.TransformerEncoderLayer default dim_feedforward
MAX_SEQ_LEN = 16        # max_seq_length
BATCH = 2
SEQ = 8
HEAD_DIM = D_MODEL // NHEAD
LN_EPS = 1e-5

# attention "swap the other batch" is a single circular sublane roll by SEQ,
# which is exact only for BATCH == 2 (16 rows, roll by 8 swaps the halves).
assert BATCH == 2

# -------- packed constant slab layout (f32, shape (CONST_ROWS, D_MODEL)) ------
# rows [0, B*S)      : positional encoding pre-tiled to B*S rows
# rows [16, 20)      : embedding.weight.T   (INPUT_SIZE, D_MODEL)
# row  20            : embedding.bias
# row  21            : output_layer.weight
# row  22, lane 0    : output_layer.bias
ROW_EMB_W = BATCH * SEQ
ROW_EMB_B = ROW_EMB_W + INPUT_SIZE
ROW_OUT_W = ROW_EMB_B + 1
ROW_OUT_B = ROW_OUT_W + 1
CONST_ROWS = 24

# ---- packed per-layer small-parameter slab (f32, (NUM_LAYERS, 8, 128)) -------
SMALL_ROWS, SMALL_LANES = 8, 128
R_BQKV, R_BO, R_LN1W, R_LN1B, R_LN2W, R_LN2B, R_B2 = range(7)


# ------------------------------- shared math ----------------------------------
def _layer_norm(v, w, b):
    mu = jnp.mean(v, axis=-1, keepdims=True)
    var = jnp.mean(jnp.square(v - mu), axis=-1, keepdims=True)
    return (v - mu) * lax.rsqrt(var + LN_EPS) * w + b


# ------------------------------- Pallas kernel --------------------------------
def weather_transformer_kernel(
    x_ref, const_ref, segb_ref,
    wqkv_ref, wo_ref, w1_ref, w2_ref, small_ref, b1_ref,
    o_ref,
    h_ref,            # VMEM scratch carrying activations across layers
):
    layer = pl.program_id(0)

    @pl.when(layer == 0)
    def _():
        # embedding (K=4 -> 4 VPU FMAs) + bias + pre-tiled positional encoding
        c = const_ref[...]
        h = x_ref[:, 0:1] * c[ROW_EMB_W:ROW_EMB_W + 1, :]
        for i in range(1, INPUT_SIZE):
            h = h + x_ref[:, i:i + 1] * c[ROW_EMB_W + i:ROW_EMB_W + i + 1, :]
        h_ref[...] = h + c[ROW_EMB_B:ROW_EMB_B + 1, :] + c[0:BATCH * SEQ, :]

    # unpack the per-layer small-parameter slab (one DMA per layer)
    small = small_ref[0]
    bqkv = small[R_BQKV:R_BQKV + 1, 0:3 * D_MODEL]
    bo = small[R_BO:R_BO + 1, 0:D_MODEL]
    ln1w = small[R_LN1W:R_LN1W + 1, 0:D_MODEL]
    ln1b = small[R_LN1B:R_LN1B + 1, 0:D_MODEL]
    ln2w = small[R_LN2W:R_LN2W + 1, 0:D_MODEL]
    ln2b = small[R_LN2B:R_LN2B + 1, 0:D_MODEL]
    b2 = small[R_B2:R_B2 + 1, 0:D_MODEL]

    h2 = h_ref[...]

    # ---------- multi-head self-attention over the *batch* axis ----------
    qkv = jnp.dot(h2.astype(jnp.bfloat16), wqkv_ref[0],
                  preferred_element_type=jnp.float32) + bqkv        # (B*S, 3D)
    q = qkv[:, 0:D_MODEL] * (1.0 / HEAD_DIM ** 0.5)
    k = qkv[:, D_MODEL:2 * D_MODEL]
    v = qkv[:, 2 * D_MODEL:3 * D_MODEL]

    # "other batch" view: circular sublane roll by SEQ swaps the two halves
    k_sw = pltpu.roll(k, SEQ, axis=0)
    v_sw = pltpu.roll(v, SEQ, axis=0)

    # per-head score sums, already broadcast to each head's 8 lanes, via one
    # block-diagonal 0/1 mask matmul each (lane-dense softmax afterwards)
    seg = segb_ref[...]
    s_same = jnp.dot(q * k, seg, preferred_element_type=jnp.float32)
    s_cross = jnp.dot(q * k_sw, seg, preferred_element_type=jnp.float32)

    mx = jnp.maximum(s_same, s_cross)
    e_same = jnp.exp(s_same - mx)
    e_cross = jnp.exp(s_cross - mx)
    inv = pl.reciprocal(e_same + e_cross, approx=True)
    ctx = (e_same * inv) * v + (e_cross * inv) * v_sw               # (B*S, D)

    attn = jnp.dot(ctx.astype(jnp.bfloat16), wo_ref[0],
                   preferred_element_type=jnp.float32) + bo
    h2 = _layer_norm(h2 + attn, ln1w, ln1b)                         # post-norm

    # ------------------------------ feed-forward ------------------------------
    ff = jnp.dot(h2.astype(jnp.bfloat16), w1_ref[0],
                 preferred_element_type=jnp.float32) + b1_ref[0]
    ff = jnp.maximum(ff, 0.0).astype(jnp.bfloat16)   # fused ReLU + downcast
    ff = jnp.dot(ff, w2_ref[0], preferred_element_type=jnp.float32) + b2
    h2 = _layer_norm(h2 + ff, ln2w, ln2b)
    h_ref[...] = h2

    @pl.when(layer == pl.num_programs(0) - 1)
    def _():
        # output_layer applied to every row; wrapper picks the last position.
        c = const_ref[...]
        dots = jnp.sum(h2 * c[ROW_OUT_W:ROW_OUT_W + 1, :],
                       axis=-1, keepdims=True)                      # (B*S, 1)
        o_ref[...] = dots + c[ROW_OUT_B:ROW_OUT_B + 1, 0:1]


# -------------------------------- wrapper --------------------------------------
def _full_spec(shape):
    zeros = (0,) * len(shape)
    return pl.BlockSpec(shape, lambda l: zeros)


def _layer_spec(shape):
    zeros = (0,) * len(shape)
    return pl.BlockSpec((1,) + tuple(shape), lambda l: (l,) + zeros)


@jax.jit
def weather_transformer(x, packed):
    B, S, F = x.shape
    assert (B, S, F) == (BATCH, SEQ, INPUT_SIZE), \
        "kernel is specialized to (BATCH, SEQ, INPUT_SIZE)"
    x2 = x.reshape(B * S, INPUT_SIZE)

    grid_spec = pltpu.PrefetchScalarGridSpec(
        num_scalar_prefetch=0,
        grid=(NUM_LAYERS,),
        in_specs=[
            _full_spec((B * S, INPUT_SIZE)),              # x (flattened)
            _full_spec((CONST_ROWS, D_MODEL)),            # packed constants
            _full_spec((D_MODEL, D_MODEL)),               # block-diag head mask
            _layer_spec((D_MODEL, 3 * D_MODEL)),          # in_proj_weight.T (bf16)
            _layer_spec((D_MODEL, D_MODEL)),              # out_proj.weight.T (bf16)
            _layer_spec((D_MODEL, FFN_HIDDEN)),           # linear1.weight.T (bf16)
            _layer_spec((FFN_HIDDEN, D_MODEL)),           # linear2.weight.T (bf16)
            _layer_spec((SMALL_ROWS, SMALL_LANES)),       # packed small params
            _layer_spec((1, FFN_HIDDEN)),                 # linear1.bias
        ],
        out_specs=_full_spec((B * S, 1)),
        scratch_shapes=[pltpu.VMEM((B * S, D_MODEL), jnp.float32)],
    )

    out = pl.pallas_call(
        weather_transformer_kernel,
        out_shape=jax.ShapeDtypeStruct((B * S, 1), jnp.float32),
        grid_spec=grid_spec,
        compiler_params=pltpu.CompilerParams(
            dimension_semantics=("arbitrary",),
            vmem_limit_bytes=8 * 1024 * 1024),
    )(x2, packed['const'], packed['seg_block'],
      packed['wqkv'], packed['wo'], packed['w1'], packed['w2'],
      packed['small'], packed['b1'])

    # == output_layer(h)[:, -1, :].squeeze(-1)
    return out[:, 0].reshape(B, S)[:, -1]


# ------------------------------- parameters ------------------------------------
def make_params(key):
    ks = jax.random.split(key, 17)

    def n(k, shape, s=0.02):
        return (s * jax.random.normal(k, shape)).astype(jnp.float32)

    return dict(
        emb_w=n(ks[0], (INPUT_SIZE, D_MODEL)),                  # embedding.weight.T
        emb_b=n(ks[1], (1, D_MODEL)),
        # module init is zeros; small randoms so the add is exercised
        pos=n(ks[2], (MAX_SEQ_LEN, D_MODEL)),
        # big matmul weights stored as bf16, fed straight to the MXU (f32 accum)
        wqkv=n(ks[3], (NUM_LAYERS, D_MODEL, 3 * D_MODEL)).astype(jnp.bfloat16),
        bqkv=n(ks[4], (NUM_LAYERS, 1, 3 * D_MODEL)),
        wo=n(ks[5], (NUM_LAYERS, D_MODEL, D_MODEL)).astype(jnp.bfloat16),
        bo=n(ks[6], (NUM_LAYERS, 1, D_MODEL)),
        ln1_w=(jnp.ones((NUM_LAYERS, 1, D_MODEL), jnp.float32)
               + n(ks[7], (NUM_LAYERS, 1, D_MODEL))),
        ln1_b=n(ks[8], (NUM_LAYERS, 1, D_MODEL)),
        ln2_w=(jnp.ones((NUM_LAYERS, 1, D_MODEL), jnp.float32)
               + n(ks[9], (NUM_LAYERS, 1, D_MODEL))),
        ln2_b=n(ks[10], (NUM_LAYERS, 1, D_MODEL)),
        w1=n(ks[11], (NUM_LAYERS, D_MODEL, FFN_HIDDEN)).astype(jnp.bfloat16),
        b1=n(ks[12], (NUM_LAYERS, 1, FFN_HIDDEN)),
        w2=n(ks[13], (NUM_LAYERS, FFN_HIDDEN, D_MODEL)).astype(jnp.bfloat16),
        b2=n(ks[14], (NUM_LAYERS, 1, D_MODEL)),
        out_w=n(ks[15], (1, D_MODEL)),                          # output_layer.weight
        out_b=n(ks[16], (1, 1)),
    )


def pack_params(params):
    """Pack the many tiny parameters into the slabs the kernel consumes."""
    # global constant slab (fetched once)
    const = jnp.zeros((CONST_ROWS, D_MODEL), jnp.float32)
    const = const.at[0:BATCH * SEQ, :].set(
        jnp.tile(params['pos'][:SEQ, :], (BATCH, 1)))
    const = const.at[ROW_EMB_W:ROW_EMB_W + INPUT_SIZE, :].set(params['emb_w'])
    const = const.at[ROW_EMB_B, :].set(params['emb_b'][0])
    const = const.at[ROW_OUT_W, :].set(params['out_w'][0])
    const = const.at[ROW_OUT_B, 0].set(params['out_b'][0, 0])

    # per-layer small-parameter slab (one DMA per layer)
    small = jnp.zeros((NUM_LAYERS, SMALL_ROWS, SMALL_LANES), jnp.float32)
    small = small.at[:, R_BQKV, 0:3 * D_MODEL].set(params['bqkv'][:, 0, :])
    small = small.at[:, R_BO, 0:D_MODEL].set(params['bo'][:, 0, :])
    small = small.at[:, R_LN1W, 0:D_MODEL].set(params['ln1_w'][:, 0, :])
    small = small.at[:, R_LN1B, 0:D_MODEL].set(params['ln1_b'][:, 0, :])
    small = small.at[:, R_LN2W, 0:D_MODEL].set(params['ln2_w'][:, 0, :])
    small = small.at[:, R_LN2B, 0:D_MODEL].set(params['ln2_b'][:, 0, :])
    small = small.at[:, R_B2, 0:D_MODEL].set(params['b2'][:, 0, :])

    # block-diagonal 0/1 head mask: segment-sum + broadcast in one matmul
    d_idx = jnp.arange(D_MODEL) // HEAD_DIM
    seg_block = (d_idx[:, None] == d_idx[None, :]).astype(jnp.float32)

    return dict(const=const, seg_block=seg_block, small=small,
                wqkv=params['wqkv'], wo=params['wo'],
                w1=params['w1'], w2=params['w2'], b1=params['b1'])


# --------------------------- independent jnp reference -------------------------
@jax.jit
def weather_transformer_ref(x, params):
    """Original per-head einsum formulation (batch_first=False semantics)."""
    B, S, _ = x.shape
    D = D_MODEL
    scale = 1.0 / (HEAD_DIM ** 0.5)
    h = (jnp.einsum('bsi,id->bsd', x, params['emb_w'],
                    preferred_element_type=jnp.float32)
         + params['emb_b'] + params['pos'][:S, :])
    for l in range(NUM_LAYERS):
        wqkv, bqkv = params['wqkv'][l], params['bqkv'][l]
        wo, bo = params['wo'][l], params['bo'][l]
        qkv = (jnp.einsum('bsd,de->bse', h.astype(wqkv.dtype), wqkv,
                          preferred_element_type=jnp.float32) + bqkv)
        q = qkv[..., 0 * D:1 * D] * scale
        k = qkv[..., 1 * D:2 * D]
        v = qkv[..., 2 * D:3 * D]
        heads = []
        for hh in range(NHEAD):
            sl = slice(hh * HEAD_DIM, (hh + 1) * HEAD_DIM)
            s = jnp.einsum('lnd,mnd->nlm', q[..., sl], k[..., sl],
                           preferred_element_type=jnp.float32)
            s = s - jnp.max(s, axis=-1, keepdims=True)
            p = jnp.exp(s)
            p = p / jnp.sum(p, axis=-1, keepdims=True)
            heads.append(jnp.einsum('nlm,mnd->lnd', p, v[..., sl],
                                    preferred_element_type=jnp.float32))
        ctx = jnp.concatenate(heads, axis=-1)
        attn = (jnp.einsum('bsd,de->bse', ctx.astype(wo.dtype), wo,
                           preferred_element_type=jnp.float32) + bo)
        h = _layer_norm(h + attn, params['ln1_w'][l], params['ln1_b'][l])
        w1, w2 = params['w1'][l], params['w2'][l]
        ff = (jnp.einsum('bsd,df->bsf', h.astype(w1.dtype), w1,
                         preferred_element_type=jnp.float32) + params['b1'][l])
        ff = jnp.maximum(ff, 0.0)
        ff = (jnp.einsum('bsf,fd->bsd', ff.astype(w2.dtype), w2,
                         preferred_element_type=jnp.float32) + params['b2'][l])
        h = _layer_norm(h + ff, params['ln2_w'][l], params['ln2_b'][l])
    last = h[:, S - 1, :]                                              # (B, D)
    return jnp.sum(last * params['out_w'], axis=-1) + params['out_b'][0, 0]


if __name__ == "__main__":
    key = jax.random.PRNGKey(0)
    k_x, k_p = jax.random.split(key)
    x = jax.random.normal(k_x, (BATCH, SEQ, INPUT_SIZE), dtype=jnp.float32)
    params = make_params(k_p)
    packed = jax.tree_util.tree_map(jnp.asarray, pack_params(params))

    out = jax.block_until_ready(weather_transformer(x, packed))
    assert out.shape == (BATCH,), out.shape

    ref = jax.block_until_ready(weather_transformer_ref(x, params))
    assert jnp.allclose(out, ref, atol=2e-3, rtol=2e-2), (out, ref)

    print("KERNEL_OK")
</pallas_src>

<mosaic_0001>
module attributes {stable_mosaic.version = 11 : i64} {
  func.func @weather_transformer_kernel(%arg0: i32, %arg1: memref<16x4xf32, #tpu.memory_space<vmem>>, %arg2: memref<24x32xf32, #tpu.memory_space<vmem>>, %arg3: memref<32x32xf32, #tpu.memory_space<vmem>>, %arg4: memref<1x32x96xbf16, #tpu.memory_space<vmem>>, %arg5: memref<1x32x32xbf16, #tpu.memory_space<vmem>>, %arg6: memref<1x32x2048xbf16, #tpu.memory_space<vmem>>, %arg7: memref<1x2048x32xbf16, #tpu.memory_space<vmem>>, %arg8: memref<1x8x128xf32, #tpu.memory_space<vmem>>, %arg9: memref<1x1x2048xf32, #tpu.memory_space<vmem>>, %arg10: memref<16x1xf32, #tpu.memory_space<vmem>>, %arg11: memref<16x32xf32, #tpu.memory_space<vmem>>) attributes {dimension_semantics = [#tpu.dimension_semantics<arbitrary>], iteration_bounds = array<i64: 2>, scalar_prefetch = 0 : i64, scratch_operands = 1 : i64, tpu.core_type = #tpu.core_type<tc>, window_params = [{pipeline_mode = #tpu.pipeline_mode<synchronous>, transform_indices = @transform_0, window_bounds = array<i64: 16, 4>}, {pipeline_mode = #tpu.pipeline_mode<synchronous>, transform_indices = @transform_1, window_bounds = array<i64: 24, 32>}, {pipeline_mode = #tpu.pipeline_mode<synchronous>, transform_indices = @transform_2, window_bounds = array<i64: 32, 32>}, {transform_indices = @transform_3, window_bounds = array<i64: 1, 32, 96>}, {transform_indices = @transform_4, window_bounds = array<i64: 1, 32, 32>}, {transform_indices = @transform_5, window_bounds = array<i64: 1, 32, 2048>}, {transform_indices = @transform_6, window_bounds = array<i64: 1, 2048, 32>}, {transform_indices = @transform_7, window_bounds = array<i64: 1, 8, 128>}, {transform_indices = @transform_8, window_bounds = array<i64: 1, 1, 2048>}, {pipeline_mode = #tpu.pipeline_mode<synchronous>, transform_indices = @transform_9, window_bounds = array<i64: 16, 1>}]} {
    %c0_i32 = arith.constant 0 : i32
    %0 = arith.cmpi eq, %arg0, %c0_i32 : i32
    %1 = arith.extui %0 : i1 to i32
    %c0_i32_0 = arith.constant 0 : i32
    %2 = arith.cmpi ne, %1, %c0_i32_0 : i32
    scf.if %2 {
      %c0_43 = arith.constant 0 : index
      %c0_44 = arith.constant 0 : index
      %115 = vector.load %arg2[%c0_43, %c0_44] : memref<24x32xf32, #tpu.memory_space<vmem>>, vector<24x32xf32>
      %c0_45 = arith.constant 0 : index
      %c0_46 = arith.constant 0 : index
      %116 = vector.load %arg1[%c0_45, %c0_46] : memref<16x4xf32, #tpu.memory_space<vmem>>, vector<16x1xf32>
      %117 = vector.extract_strided_slice %115 {offsets = [16, 0], sizes = [1, 32], strides = [1, 1]} : vector<24x32xf32> to vector<1x32xf32>
      %118 = vector.broadcast %116 : vector<16x1xf32> to vector<16x32xf32>
      %119 = vector.broadcast %117 : vector<1x32xf32> to vector<16x32xf32>
      %120 = arith.mulf %118, %119 : vector<16x32xf32>
      %c0_47 = arith.constant 0 : index
      %c1 = arith.constant 1 : index
      %121 = vector.load %arg1[%c0_47, %c1] : memref<16x4xf32, #tpu.memory_space<vmem>>, vector<16x1xf32>
      %122 = vector.extract_strided_slice %115 {offsets = [17, 0], sizes = [1, 32], strides = [1, 1]} : vector<24x32xf32> to vector<1x32xf32>
      %123 = vector.broadcast %121 : vector<16x1xf32> to vector<16x32xf32>
      %124 = vector.broadcast %122 : vector<1x32xf32> to vector<16x32xf32>
      %125 = arith.mulf %123, %124 : vector<16x32xf32>
      %126 = arith.addf %120, %125 : vector<16x32xf32>
      %c0_48 = arith.constant 0 : index
      %c2 = arith.constant 2 : index
      %127 = vector.load %arg1[%c0_48, %c2] : memref<16x4xf32, #tpu.memory_space<vmem>>, vector<16x1xf32>
      %128 = vector.extract_strided_slice %115 {offsets = [18, 0], sizes = [1, 32], strides = [1, 1]} : vector<24x32xf32> to vector<1x32xf32>
      %129 = vector.broadcast %127 : vector<16x1xf32> to vector<16x32xf32>
      %130 = vector.broadcast %128 : vector<1x32xf32> to vector<16x32xf32>
      %131 = arith.mulf %129, %130 : vector<16x32xf32>
      %132 = arith.addf %126, %131 : vector<16x32xf32>
      %c0_49 = arith.constant 0 : index
      %c3 = arith.constant 3 : index
      %133 = vector.load %arg1[%c0_49, %c3] : memref<16x4xf32, #tpu.memory_space<vmem>>, vector<16x1xf32>
      %134 = vector.extract_strided_slice %115 {offsets = [19, 0], sizes = [1, 32], strides = [1, 1]} : vector<24x32xf32> to vector<1x32xf32>
      %135 = vector.broadcast %133 : vector<16x1xf32> to vector<16x32xf32>
      %136 = vector.broadcast %134 : vector<1x32xf32> to vector<16x32xf32>
      %137 = arith.mulf %135, %136 : vector<16x32xf32>
      %138 = arith.addf %132, %137 : vector<16x32xf32>
      %139 = vector.extract_strided_slice %115 {offsets = [20, 0], sizes = [1, 32], strides = [1, 1]} : vector<24x32xf32> to vector<1x32xf32>
      %140 = vector.broadcast %139 : vector<1x32xf32> to vector<16x32xf32>
      %141 = arith.addf %138, %140 : vector<16x32xf32>
      %142 = vector.extract_strided_slice %115 {offsets = [0, 0], sizes = [16, 32], strides = [1, 1]} : vector<24x32xf32> to vector<16x32xf32>
      %143 = arith.addf %141, %142 : vector<16x32xf32>
      %c0_50 = arith.constant 0 : index
      %c0_51 = arith.constant 0 : index
      %144 = vector.load %arg11[%c0_50, %c0_51] : memref<16x32xf32, #tpu.memory_space<vmem>>, vector<16x32xf32>
      tpu.vector_store %arg11[%c0_50, %c0_51], %143 {strides = array<i32>} : memref<16x32xf32, #tpu.memory_space<vmem>>, vector<16x32xf32>,
    } else {
    }
    %c0 = arith.constant 0 : index
    %c0_1 = arith.constant 0 : index
    %c0_2 = arith.constant 0 : index
    %3 = vector.load %arg8[%c0, %c0_1, %c0_2] : memref<1x8x128xf32, #tpu.memory_space<vmem>>, vector<1x8x128xf32>
    %4 = vector.shape_cast %3 : vector<1x8x128xf32> to vector<8x128xf32>
    %5 = vector.extract_strided_slice %4 {offsets = [0, 0], sizes = [1, 96], strides = [1, 1]} : vector<8x128xf32> to vector<1x96xf32>
    %6 = vector.extract_strided_slice %4 {offsets = [1, 0], sizes = [1, 32], strides = [1, 1]} : vector<8x128xf32> to vector<1x32xf32>
    %7 = vector.extract_strided_slice %4 {offsets = [2, 0], sizes = [1, 32], strides = [1, 1]} : vector<8x128xf32> to vector<1x32xf32>
    %8 = vector.extract_strided_slice %4 {offsets = [3, 0], sizes = [1, 32], strides = [1, 1]} : vector<8x128xf32> to vector<1x32xf32>
    %9 = vector.extract_strided_slice %4 {offsets = [4, 0], sizes = [1, 32], strides = [1, 1]} : vector<8x128xf32> to vector<1x32xf32>
    %10 = vector.extract_strided_slice %4 {offsets = [5, 0], sizes = [1, 32], strides = [1, 1]} : vector<8x128xf32> to vector<1x32xf32>
    %11 = vector.extract_strided_slice %4 {offsets = [6, 0], sizes = [1, 32], strides = [1, 1]} : vector<8x128xf32> to vector<1x32xf32>
    %c0_3 = arith.constant 0 : index
    %c0_4 = arith.constant 0 : index
    %12 = vector.load %arg11[%c0_3, %c0_4] : memref<16x32xf32, #tpu.memory_space<vmem>>, vector<16x32xf32>
    %13 = arith.truncf %12 : vector<16x32xf32> to vector<16x32xbf16>
    %c0_5 = arith.constant 0 : index
    %c0_6 = arith.constant 0 : index
    %c0_7 = arith.constant 0 : index
    %14 = vector.load %arg4[%c0_5, %c0_6, %c0_7] : memref<1x32x96xbf16, #tpu.memory_space<vmem>>, vector<1x32x96xbf16>
    %15 = vector.shape_cast %14 : vector<1x32x96xbf16> to vector<32x96xbf16>
    %cst = arith.constant dense<0.000000e+00> : vector<16x96xf32>
    %16 = tpu.matmul %13, %15, %cst {dimension_numbers = #tpu.dot_dimension_numbers<[1], [0], [0], [1], [0, 0, 1, 1], [], []>} : vector<16x32xbf16>, vector<32x96xbf16>, vector<16x96xf32> -> vector<16x96xf32>
    %17 = vector.broadcast %5 : vector<1x96xf32> to vector<16x96xf32>
    %18 = arith.addf %16, %17 : vector<16x96xf32>
    %19 = vector.extract_strided_slice %18 {offsets = [0, 0], sizes = [16, 32], strides = [1, 1]} : vector<16x96xf32> to vector<16x32xf32>
    %cst_8 = arith.constant 0.353553385 : f32
    %20 = vector.broadcast %cst_8 : f32 to vector<16x32xf32>
    %21 = arith.mulf %19, %20 : vector<16x32xf32>
    %22 = vector.extract_strided_slice %18 {offsets = [0, 32], sizes = [16, 32], strides = [1, 1]} : vector<16x96xf32> to vector<16x32xf32>
    %23 = vector.extract_strided_slice %18 {offsets = [0, 64], sizes = [16, 32], strides = [1, 1]} : vector<16x96xf32> to vector<16x32xf32>
    %c8_i32 = arith.constant 8 : i32
    %24 = tpu.dynamic_rotate %22 by %c8_i32 dim 0 : vector<16x32xf32>, i32 -> vector<16x32xf32>
    %c8_i32_9 = arith.constant 8 : i32
    %25 = tpu.dynamic_rotate %23 by %c8_i32_9 dim 0 : vector<16x32xf32>, i32 -> vector<16x32xf32>
    %c0_10 = arith.constant 0 : index
    %c0_11 = arith.constant 0 : index
    %26 = vector.load %arg3[%c0_10, %c0_11] : memref<32x32xf32, #tpu.memory_space<vmem>>, vector<32x32xf32>
    %27 = arith.mulf %21, %22 : vector<16x32xf32>
    %cst_12 = arith.constant dense<0.000000e+00> : vector<16x32xf32>
    %28 = tpu.matmul %27, %26, %cst_12 {dimension_numbers = #tpu.dot_dimension_numbers<[1], [0], [0], [1], [0, 0, 1, 1], [], []>} : vector<16x32xf32>, vector<32x32xf32>, vector<16x32xf32> -> vector<16x32xf32>
    %29 = arith.mulf %21, %24 : vector<16x32xf32>
    %cst_13 = arith.constant dense<0.000000e+00> : vector<16x32xf32>
    %30 = tpu.matmul %29, %26, %cst_13 {dimension_numbers = #tpu.dot_dimension_numbers<[1], [0], [0], [1], [0, 0, 1, 1], [], []>} : vector<16x32xf32>, vector<32x32xf32>, vector<16x32xf32> -> vector<16x32xf32>
    %31 = arith.maximumf %28, %30 : vector<16x32xf32>
    %32 = arith.subf %28, %31 : vector<16x32xf32>
    %33 = math.exp %32 : vector<16x32xf32>
    %34 = arith.subf %30, %31 : vector<16x32xf32>
    %35 = math.exp %34 : vector<16x32xf32>
    %36 = arith.addf %33, %35 : vector<16x32xf32>
    %37 = tpu.reciprocal %36 {approx = true} : vector<16x32xf32> -> vector<16x32xf32>
    %38 = arith.mulf %33, %37 : vector<16x32xf32>
    %39 = arith.mulf %38, %23 : vector<16x32xf32>
    %40 = arith.mulf %35, %37 : vector<16x32xf32>
    %41 = arith.mulf %40, %25 : vector<16x32xf32>
    %42 = arith.addf %39, %41 : vector<16x32xf32>
    %43 = arith.truncf %42 : vector<16x32xf32> to vector<16x32xbf16>
    %c0_14 = arith.constant 0 : index
    %c0_15 = arith.constant 0 : index
    %c0_16 = arith.constant 0 : index
    %44 = vector.load %arg5[%c0_14, %c0_15, %c0_16] : memref<1x32x32xbf16, #tpu.memory_space<vmem>>, vector<1x32x32xbf16>
    %45 = vector.shape_cast %44 : vector<1x32x32xbf16> to vector<32x32xbf16>
    %cst_17 = arith.constant dense<0.000000e+00> : vector<16x32xf32>
    %46 = tpu.matmul %43, %45, %cst_17 {dimension_numbers = #tpu.dot_dimension_numbers<[1], [0], [0], [1], [0, 0, 1, 1], [], []>} : vector<16x32xbf16>, vector<32x32xbf16>, vector<16x32xf32> -> vector<16x32xf32>
    %47 = vector.broadcast %6 : vector<1x32xf32> to vector<16x32xf32>
    %48 = arith.addf %46, %47 : vector<16x32xf32>
    %49 = arith.addf %12, %48 : vector<16x32xf32>
    %cst_18 = arith.constant dense<0.000000e+00> : vector<16xf32>
    %50 = vector.multi_reduction <add>, %49, %cst_18 [1] : vector<16x32xf32> to vector<16xf32>
    %51 = vector.shape_cast %50 : vector<16xf32> to vector<16x1xf32>
    %cst_19 = arith.constant 3.200000e+01 : f32
    %52 = vector.broadcast %cst_19 : f32 to vector<16x1xf32>
    %53 = arith.divf %51, %52 : vector<16x1xf32>
    %54 = vector.broadcast %53 : vector<16x1xf32> to vector<16x32xf32>
    %55 = arith.subf %49, %54 : vector<16x32xf32>
    %56 = arith.mulf %55, %55 : vector<16x32xf32>
    %cst_20 = arith.constant dense<0.000000e+00> : vector<16xf32>
    %57 = vector.multi_reduction <add>, %56, %cst_20 [1] : vector<16x32xf32> to vector<16xf32>
    %58 = vector.shape_cast %57 : vector<16xf32> to vector<16x1xf32>
    %cst_21 = arith.constant 3.200000e+01 : f32
    %59 = vector.broadcast %cst_21 : f32 to vector<16x1xf32>
    %60 = arith.divf %58, %59 : vector<16x1xf32>
    %61 = vector.broadcast %53 : vector<16x1xf32> to vector<16x32xf32>
    %62 = arith.subf %49, %61 : vector<16x32xf32>
    %cst_22 = arith.constant 9.99999974E-6 : f32
    %63 = vector.broadcast %cst_22 : f32 to vector<16x1xf32>
    %64 = arith.addf %60, %63 : vector<16x1xf32>
    %65 = math.rsqrt %64 : vector<16x1xf32>
    %66 = vector.broadcast %65 : vector<16x1xf32> to vector<16x32xf32>
    %67 = arith.mulf %62, %66 : vector<16x32xf32>
    %68 = vector.broadcast %7 : vector<1x32xf32> to vector<16x32xf32>
    %69 = arith.mulf %67, %68 : vector<16x32xf32>
    %70 = vector.broadcast %8 : vector<1x32xf32> to vector<16x32xf32>
    %71 = arith.addf %69, %70 : vector<16x32xf32>
    %72 = arith.truncf %71 : vector<16x32xf32> to vector<16x32xbf16>
    %c0_23 = arith.constant 0 : index
    %c0_24 = arith.constant 0 : index
    %c0_25 = arith.constant 0 : index
    %73 = vector.load %arg6[%c0_23, %c0_24, %c0_25] : memref<1x32x2048xbf16, #tpu.memory_space<vmem>>, vector<1x32x2048xbf16>
    %74 = vector.shape_cast %73 : vector<1x32x2048xbf16> to vector<32x2048xbf16>
    %cst_26 = arith.constant dense<0.000000e+00> : vector<16x2048xf32>
    %75 = tpu.matmul %72, %74, %cst_26 {dimension_numbers = #tpu.dot_dimension_numbers<[1], [0], [0], [1], [0, 0, 1, 1], [], []>} : vector<16x32xbf16>, vector<32x2048xbf16>, vector<16x2048xf32> -> vector<16x2048xf32>
    %c0_27 = arith.constant 0 : index
    %c0_28 = arith.constant 0 : index
    %c0_29 = arith.constant 0 : index
    %76 = vector.load %arg9[%c0_27, %c0_28, %c0_29] : memref<1x1x2048xf32, #tpu.memory_space<vmem>>, vector<1x1x2048xf32>
    %77 = vector.shape_cast %76 : vector<1x1x2048xf32> to vector<1x2048xf32>
    %78 = vector.broadcast %77 : vector<1x2048xf32> to vector<16x2048xf32>
    %79 = arith.addf %75, %78 : vector<16x2048xf32>
    %cst_30 = arith.constant 0.000000e+00 : f32
    %80 = vector.broadcast %cst_30 : f32 to vector<16x2048xf32>
    %81 = arith.maximumf %79, %80 : vector<16x2048xf32>
    %82 = arith.truncf %81 : vector<16x2048xf32> to vector<16x2048xbf16>
    %c0_31 = arith.constant 0 : index
    %c0_32 = arith.constant 0 : index
    %c0_33 = arith.constant 0 : index
    %83 = vector.load %arg7[%c0_31, %c0_32, %c0_33] : memref<1x2048x32xbf16, #tpu.memory_space<vmem>>, vector<1x2048x32xbf16>
    %84 = vector.shape_cast %83 : vector<1x2048x32xbf16> to vector<2048x32xbf16>
    %cst_34 = arith.constant dense<0.000000e+00> : vector<16x32xf32>
    %85 = tpu.matmul %82, %84, %cst_34 {dimension_numbers = #tpu.dot_dimension_numbers<[1], [0], [0], [1], [0, 0, 1, 1], [], []>} : vector<16x2048xbf16>, vector<2048x32xbf16>, vector<16x32xf32> -> vector<16x32xf32>
    %86 = vector.broadcast %11 : vector<1x32xf32> to vector<16x32xf32>
    %87 = arith.addf %85, %86 : vector<16x32xf32>
    %88 = arith.addf %71, %87 : vector<16x32xf32>
    %cst_35 = arith.constant dense<0.000000e+00> : vector<16xf32>
    %89 = vector.multi_reduction <add>, %88, %cst_35 [1] : vector<16x32xf32> to vector<16xf32>
    %90 = vector.shape_cast %89 : vector<16xf32> to vector<16x1xf32>
    %cst_36 = arith.constant 3.200000e+01 : f32
    %91 = vector.broadcast %cst_36 : f32 to vector<16x1xf32>
    %92 = arith.divf %90, %91 : vector<16x1xf32>
    %93 = vector.broadcast %92 : vector<16x1xf32> to vector<16x32xf32>
    %94 = arith.subf %88, %93 : vector<16x32xf32>
    %95 = arith.mulf %94, %94 : vector<16x32xf32>
    %cst_37 = arith.constant dense<0.000000e+00> : vector<16xf32>
    %96 = vector.multi_reduction <add>, %95, %cst_37 [1] : vector<16x32xf32> to vector<16xf32>
    %97 = vector.shape_cast %96 : vector<16xf32> to vector<16x1xf32>
    %cst_38 = arith.constant 3.200000e+01 : f32
    %98 = vector.broadcast %cst_38 : f32 to vector<16x1xf32>
    %99 = arith.divf %97, %98 : vector<16x1xf32>
    %100 = vector.broadcast %92 : vector<16x1xf32> to vector<16x32xf32>
    %101 = arith.subf %88, %100 : vector<16x32xf32>
    %cst_39 = arith.constant 9.99999974E-6 : f32
    %102 = vector.broadcast %cst_39 : f32 to vector<16x1xf32>
    %103 = arith.addf %99, %102 : vector<16x1xf32>
    %104 = math.rsqrt %103 : vector<16x1xf32>
    %105 = vector.broadcast %104 : vector<16x1xf32> to vector<16x32xf32>
    %106 = arith.mulf %101, %105 : vector<16x32xf32>
    %107 = vector.broadcast %9 : vector<1x32xf32> to vector<16x32xf32>
    %108 = arith.mulf %106, %107 : vector<16x32xf32>
    %109 = vector.broadcast %10 : vector<1x32xf32> to vector<16x32xf32>
    %110 = arith.addf %108, %109 : vector<16x32xf32>
    %c0_40 = arith.constant 0 : index
    %c0_41 = arith.constant 0 : index
    %111 = vector.load %arg11[%c0_40, %c0_41] : memref<16x32xf32, #tpu.memory_space<vmem>>, vector<16x32xf32>
    tpu.vector_store %arg11[%c0_40, %c0_41], %110 {strides = array<i32>} : memref<16x32xf32, #tpu.memory_space<vmem>>, vector<16x32xf32>,
    %c1_i32 = arith.constant 1 : i32
    %112 = arith.cmpi eq, %arg0, %c1_i32 : i32
    %113 = arith.extui %112 : i1 to i32
    %c0_i32_42 = arith.constant 0 : i32
    %114 = arith.cmpi ne, %113, %c0_i32_42 : i32
    scf.if %114 {
      %c0_43 = arith.constant 0 : index
      %c0_44 = arith.constant 0 : index
      %115 = vector.load %arg2[%c0_43, %c0_44] : memref<24x32xf32, #tpu.memory_space<vmem>>, vector<24x32xf32>
      %116 = vector.extract_strided_slice %115 {offsets = [21, 0], sizes = [1, 32], strides = [1, 1]} : vector<24x32xf32> to vector<1x32xf32>
      %117 = vector.broadcast %116 : vector<1x32xf32> to vector<16x32xf32>
      %118 = arith.mulf %110, %117 : vector<16x32xf32>
      %cst_45 = arith.constant dense<0.000000e+00> : vector<16xf32>
      %119 = vector.multi_reduction <add>, %118, %cst_45 [1] : vector<16x32xf32> to vector<16xf32>
      %120 = vector.shape_cast %119 : vector<16xf32> to vector<16x1xf32>
      %121 = vector.extract_strided_slice %115 {offsets = [22, 0], sizes = [1, 1], strides = [1, 1]} : vector<24x32xf32> to vector<1x1xf32>
      %122 = vector.broadcast %121 : vector<1x1xf32> to vector<16x1xf32>
      %123 = arith.addf %120, %122 : vector<16x1xf32>
      %c0_46 = arith.constant 0 : index
      %c0_47 = arith.constant 0 : index
      %124 = vector.load %arg10[%c0_46, %c0_47] : memref<16x1xf32, #tpu.memory_space<vmem>>, vector<16x1xf32>
      tpu.vector_store %arg10[%c0_46, %c0_47], %123 {strides = array<i32>} : memref<16x1xf32, #tpu.memory_space<vmem>>, vector<16x1xf32>,
    } else {
    }
    return
  }
  func.func @transform_0(%arg0: i32) -> (i32, i32) {
    %c0_i32 = arith.constant 0 : i32
    %c0_i32_0 = arith.constant 0 : i32
    %c0_i32_1 = arith.constant 0 : i32
    return %c0_i32, %c0_i32_0 : i32, i32
  }
  func.func @transform_1(%arg0: i32) -> (i32, i32) {
    %c0_i32 = arith.constant 0 : i32
    %c0_i32_0 = arith.constant 0 : i32
    %c0_i32_1 = arith.constant 0 : i32
    return %c0_i32, %c0_i32_0 : i32, i32
  }
  func.func @transform_2(%arg0: i32) -> (i32, i32) {
    %c0_i32 = arith.constant 0 : i32
    %c0_i32_0 = arith.constant 0 : i32
    %c0_i32_1 = arith.constant 0 : i32
    return %c0_i32, %c0_i32_0 : i32, i32
  }
  func.func @transform_3(%arg0: i32) -> (i32, i32, i32) {
    %c0_i32 = arith.constant 0 : i32
    %c0_i32_0 = arith.constant 0 : i32
    %c0_i32_1 = arith.constant 0 : i32
    return %arg0, %c0_i32, %c0_i32_0 : i32, i32, i32
  }
  func.func @transform_4(%arg0: i32) -> (i32, i32, i32) {
    %c0_i32 = arith.constant 0 : i32
    %c0_i32_0 = arith.constant 0 : i32
    %c0_i32_1 = arith.constant 0 : i32
    return %arg0, %c0_i32, %c0_i32_0 : i32, i32, i32
  }
  func.func @transform_5(%arg0: i32) -> (i32, i32, i32) {
    %c0_i32 = arith.constant 0 : i32
    %c0_i32_0 = arith.constant 0 : i32
    %c0_i32_1 = arith.constant 0 : i32
    return %arg0, %c0_i32, %c0_i32_0 : i32, i32, i32
  }
  func.func @transform_6(%arg0: i32) -> (i32, i32, i32) {
    %c0_i32 = arith.constant 0 : i32
    %c0_i32_0 = arith.constant 0 : i32
    %c0_i32_1 = arith.constant 0 : i32
    return %arg0, %c0_i32, %c0_i32_0 : i32, i32, i32
  }
  func.func @transform_7(%arg0: i32) -> (i32, i32, i32) {
    %c0_i32 = arith.constant 0 : i32
    %c0_i32_0 = arith.constant 0 : i32
    %c0_i32_1 = arith.constant 0 : i32
    return %arg0, %c0_i32, %c0_i32_0 : i32, i32, i32
  }
  func.func @transform_8(%arg0: i32) -> (i32, i32, i32) {
    %c0_i32 = arith.constant 0 : i32
    %c0_i32_0 = arith.constant 0 : i32
    %c0_i32_1 = arith.constant 0 : i32
    return %arg0, %c0_i32, %c0_i32_0 : i32, i32, i32
  }
  func.func @transform_9(%arg0: i32) -> (i32, i32) {
    %c0_i32 = arith.constant 0 : i32
    %c0_i32_0 = arith.constant 0 : i32
    %c0_i32_1 = arith.constant 0 : i32
    return %c0_i32, %c0_i32_0 : i32, i32
  }
}

</mosaic_0001>

<llo_original>
// kernel: squeeze.2
$region0: #{squeeze.2}
  %s0 = inlined_call_operand.vmem [shape: f32[16], index: 0, kind: input, shape index: {}]
  %s1 = inlined_call_operand.vmem [shape: f32[2,8], index: 1, kind: output, shape index: {}]
  $region1: #{squeeze.2} parent=0
    #allocation0 [shape = 'u8[4096]{0}', space=vmem, size = 0x1000, scoped, tag = 'scoped mem for output reshape']
    #allocation1 [shape = 'u8[4096]{0}', space=vmem, size = 0x1000, scoped, tag = 'scoped mem for input reshape']
    %s3 = ssub.s32 2, 1
    %v4 = vld [vmem:[%s0] sm:%s3]
    %5 = vst [vmem:[#allocation1] sm:%s3] %v4
    %v6 = vld [vmem:[#allocation1] sm:$0x1]
    %vm7 = vcmask 64512
    %8 = vst.msk [vmem:[#allocation0] sm:$0x1] %vm7, %v6
    %v9 = vld [vmem:[#allocation1] sm:$0x1]
    %10 = vrot.lane.b32.xlu0 %v9, 120
    %v11 = vpop.permute.xlu0 %10
    %vm12 = vcmask 64512
    %s13 = scalar_lea.vmem [#allocation0], 1
    %14 = vst.msk [vmem:[%s13] sm:$0x1] %vm12, %v11
    %s16 = ssub.s32 4, 1
    %v17 = vld [vmem:[#allocation0] sm:%s16]
    %s19 = ssub.s32 4, 1
    %20 = vst [vmem:[%s1] sm:%s19] %v17

// kernel: weather_transformer.1
$region0: #{weather_transformer.1}
  #allocation0 [shape = 'u32[]', space=smem, size = 0x4, offset = 0x4, fixed_abs, tag = 'smem constant byte address 0x4 - core index']
  #allocation1 [shape = 'u32[72,128]{1,0:T(1,128)}', space=vmem, size = 0x9000, scoped, tag = 'internal scratch']
  #allocation2 [shape = 'f32[16,32]{1,0:T(8,128)}', space=vmem, size = 0x2000, scoped, tag = 'scratch operand']
  %s0 = inlined_call_operand.vmem [shape: f32[16,4], index: 0, kind: input, shape index: {}]
  %s1 = inlined_call_operand.vmem [shape: f32[24,32], index: 1, kind: input, shape index: {}]
  %s2 = inlined_call_operand.vmem [shape: f32[32,32], index: 2, kind: input, shape index: {}]
  %s3 = inlined_call_operand.vmem [shape: bf16[2,32,96], index: 3, kind: input, shape index: {}]
  %s4 = inlined_call_operand.vmem [shape: bf16[2,32,32], index: 4, kind: input, shape index: {}]
  %s5 = inlined_call_operand.vmem [shape: bf16[2,32,2048], index: 5, kind: input, shape index: {}]
  %s6 = inlined_call_operand.vmem [shape: bf16[2,2048,32], index: 6, kind: input, shape index: {}]
  %s7 = inlined_call_operand.vmem [shape: f32[2,8,128], index: 7, kind: input, shape index: {}]
  %s8 = inlined_call_operand.vmem [shape: f32[2,1,2048], index: 8, kind: input, shape index: {}]
  %s9 = inlined_call_operand.vmem [shape: f32[16,1], index: 9, kind: output, shape index: {}]
  %s10 = sld [smem:[#allocation0]]
  $region77: #{weather_transformer.1} parent=0
    _
  %s12 = ssub.s32 1, %s10
  %s13 = scalar_select 0, %s12, %s10
  loop: start=0, step=1, limit=4
  $region2: #{weather_transformer.1} parent=0 // loop_pre_header
    _
  $region3: #{weather_transformer.1} parent=0 // loop_header
    %s15 = sphi 0, %s19
    %p16 = scmp.ge.s32.totalorder %s15, 4
    %s23 = sphi 0, %s23
    %s25 = sphi 0, %s23
    %s26 = sphi 0, %s25
    %s40 = sphi 0, %s26
    %s44 = sphi 0, %s44
    %s46 = sphi 0, %s44
    %s47 = sphi 0, %s46
    %s61 = sphi 0, %s47
    %s65 = sphi 0, %s65
    %s67 = sphi 0, %s65
    %s68 = sphi 0, %s67
    %s82 = sphi 0, %s68
    %s88 = sphi 0, %s90
    %s91 = sphi 0, %s88
    %s92 = sphi 0, %s91
    %s108 = sphi 0, %s92
    %s114 = sphi 0, %s116
    %s117 = sphi 0, %s114
    %s118 = sphi 0, %s117
    %s134 = sphi 0, %s118
    %s140 = sphi 0, %s142
    %s143 = sphi 0, %s140
    %s144 = sphi 0, %s143
    %s160 = sphi 0, %s144
    %s166 = sphi 0, %s168
    %s169 = sphi 0, %s166
    %s170 = sphi 0, %s169
    %s186 = sphi 0, %s170
    %s192 = sphi 0, %s194
    %s195 = sphi 0, %s192
    %s196 = sphi 0, %s195
    %s212 = sphi 0, %s196
    %s218 = sphi 0, %s220
    %s221 = sphi 0, %s218
    %s222 = sphi 0, %s221
    %s238 = sphi 0, %s222
    %s242 = sphi 0, %s242
    %s244 = sphi 0, %s242
    %s245 = sphi 0, %s244
    %s259 = sphi 0, %s245
  $region4: #{weather_transformer.1} parent=0 // loop_header_branch
    %18 = sbr.rel (%p16) target = $region8
  $region5: #{weather_transformer.1} parent=0 // loop_body
    %s20 = ssub.s32 %s15, 1
    %s21 = ssub.s32 %s15, 2
    %s22 = sadd.s32 %s15, 1
    %s24 = sadd.s32 %s23, 1
    %p27 = scmp.eq.s32.totalorder %s15, 1
    %p28 = scmp.ne.s32.totalorder %s23, %s25
    %p29 = scmp.eq.s32.totalorder %s15, 0
    %p30 = por %p28, %p29
    %p31 = scmp.ne.s32.totalorder %s23, %s25
    %p32 = scmp.eq.s32.totalorder %s20, 1
    %p33 = por %p31, %p32
    %p34 = scmp.ne.s32.totalorder %s25, %s26
    %p35 = scmp.eq.s32.totalorder %s20, 0
    %p36 = por %p34, %p35
    %p37 = scmp.ne.s32.totalorder %s25, %s26
    %p38 = scmp.eq.s32.totalorder %s21, 1
    %p39 = por %p37, %p38
    %p41 = scmp.ne.s32.totalorder %s26, %s40
    %p42 = scmp.eq.s32.totalorder %s21, 0
    %p43 = por %p41, %p42
    %s45 = sadd.s32 %s44, 1
    %p48 = scmp.eq.s32.totalorder %s15, 1
    %p49 = scmp.ne.s32.totalorder %s44, %s46
    %p50 = scmp.eq.s32.totalorder %s15, 0
    %p51 = por %p49, %p50
    %p52 = scmp.ne.s32.totalorder %s44, %s46
    %p53 = scmp.eq.s32.totalorder %s20, 1
    %p54 = por %p52, %p53
    %p55 = scmp.ne.s32.totalorder %s46, %s47
    %p56 = scmp.eq.s32.totalorder %s20, 0
    %p57 = por %p55, %p56
    %p58 = scmp.ne.s32.totalorder %s46, %s47
    %p59 = scmp.eq.s32.totalorder %s21, 1
    %p60 = por %p58, %p59
    %p62 = scmp.ne.s32.totalorder %s47, %s61
    %p63 = scmp.eq.s32.totalorder %s21, 0
    %p64 = por %p62, %p63
    %s66 = sadd.s32 %s65, 1
    %p69 = scmp.eq.s32.totalorder %s15, 1
    %p70 = scmp.ne.s32.totalorder %s65, %s67
    %p71 = scmp.eq.s32.totalorder %s15, 0
    %p72 = por %p70, %p71
    %p73 = scmp.ne.s32.totalorder %s65, %s67
    %p74 = scmp.eq.s32.totalorder %s20, 1
    %p75 = por %p73, %p74
    %p76 = scmp.ne.s32.totalorder %s67, %s68
    %p77 = scmp.eq.s32.totalorder %s20, 0
    %p78 = por %p76, %p77
    %p79 = scmp.ne.s32.totalorder %s67, %s68
    %p80 = scmp.eq.s32.totalorder %s21, 1
    %p81 = por %p79, %p80
    %p83 = scmp.ne.s32.totalorder %s68, %s82
    %p84 = scmp.eq.s32.totalorder %s21, 0
    %p85 = por %p83, %p84
    %s86 = ssub.s32 %s15, %s22
    %p87 = scmp.eq.s32.totalorder %s86, 0
    %s89 = sadd.s32 %s88, 1
    %s90 = scalar_select %p87, %s88, %s89
    %p93 = pneg %p87
    %p94 = scmp.eq.s32.totalorder %s15, 1
    %p95 = por %p93, %p94
    %p96 = scmp.ne.s32.totalorder %s88, %s91
    %p97 = scmp.eq.s32.totalorder %s15, 0
    %p98 = por %p96, %p97
    %p99 = scmp.ne.s32.totalorder %s88, %s91
    %p100 = scmp.eq.s32.totalorder %s20, 1
    %p101 = por %p99, %p100
    %p102 = scmp.ne.s32.totalorder %s91, %s92
    %p103 = scmp.eq.s32.totalorder %s20, 0
    %p104 = por %p102, %p103
    %p105 = scmp.ne.s32.totalorder %s91, %s92
    %p106 = scmp.eq.s32.totalorder %s21, 1
    %p107 = por %p105, %p106
    %p109 = scmp.ne.s32.totalorder %s92, %s108
    %p110 = scmp.eq.s32.totalorder %s21, 0
    %p111 = por %p109, %p110
    %s112 = ssub.s32 %s15, %s22
    %p113 = scmp.eq.s32.totalorder %s112, 0
    %s115 = sadd.s32 %s114, 1
    %s116 = scalar_select %p113, %s114, %s115
    %p119 = pneg %p113
    %p120 = scmp.eq.s32.totalorder %s15, 1
    %p121 = por %p119, %p120
    %p122 = scmp.ne.s32.totalorder %s114, %s117
    %p123 = scmp.eq.s32.totalorder %s15, 0
    %p124 = por %p122, %p123
    %p125 = scmp.ne.s32.totalorder %s114, %s117
    %p126 = scmp.eq.s32.totalorder %s20, 1
    %p127 = por %p125, %p126
    %p128 = scmp.ne.s32.totalorder %s117, %s118
    %p129 = scmp.eq.s32.totalorder %s20, 0
    %p130 = por %p128, %p129
    %p131 = scmp.ne.s32.totalorder %s117, %s118
    %p132 = scmp.eq.s32.totalorder %s21, 1
    %p133 = por %p131, %p132
    %p135 = scmp.ne.s32.totalorder %s118, %s134
    %p136 = scmp.eq.s32.totalorder %s21, 0
    %p137 = por %p135, %p136
    %s138 = ssub.s32 %s15, %s22
    %p139 = scmp.eq.s32.totalorder %s138, 0
    %s141 = sadd.s32 %s140, 1
    %s142 = scalar_select %p139, %s140, %s141
    %p145 = pneg %p139
    %p146 = scmp.eq.s32.totalorder %s15, 1
    %p147 = por %p145, %p146
    %p148 = scmp.ne.s32.totalorder %s140, %s143
    %p149 = scmp.eq.s32.totalorder %s15, 0
    %p150 = por %p148, %p149
    %p151 = scmp.ne.s32.totalorder %s140, %s143
    %p152 = scmp.eq.s32.totalorder %s20, 1
    %p153 = por %p151, %p152
    %p154 = scmp.ne.s32.totalorder %s143, %s144
    %p155 = scmp.eq.s32.totalorder %s20, 0
    %p156 = por %p154, %p155
    %p157 = scmp.ne.s32.totalorder %s143, %s144
    %p158 = scmp.eq.s32.totalorder %s21, 1
    %p159 = por %p157, %p158
    %p161 = scmp.ne.s32.totalorder %s144, %s160
    %p162 = scmp.eq.s32.totalorder %s21, 0
    %p163 = por %p161, %p162
    %s164 = ssub.s32 %s15, %s22
    %p165 = scmp.eq.s32.totalorder %s164, 0
    %s167 = sadd.s32 %s166, 1
    %s168 = scalar_select %p165, %s166, %s167
    %p171 = pneg %p165
    %p172 = scmp.eq.s32.totalorder %s15, 1
    %p173 = por %p171, %p172
    %p174 = scmp.ne.s32.totalorder %s166, %s169
    %p175 = scmp.eq.s32.totalorder %s15, 0
    %p176 = por %p174, %p175
    %p177 = scmp.ne.s32.totalorder %s166, %s169
    %p178 = scmp.eq.s32.totalorder %s20, 1
    %p179 = por %p177, %p178
    %p180 = scmp.ne.s32.totalorder %s169, %s170
    %p181 = scmp.eq.s32.totalorder %s20, 0
    %p182 = por %p180, %p181
    %p183 = scmp.ne.s32.totalorder %s169, %s170
    %p184 = scmp.eq.s32.totalorder %s21, 1
    %p185 = por %p183, %p184
    %p187 = scmp.ne.s32.totalorder %s170, %s186
    %p188 = scmp.eq.s32.totalorder %s21, 0
    %p189 = por %p187, %p188
    %s190 = ssub.s32 %s15, %s22
    %p191 = scmp.eq.s32.totalorder %s190, 0
    %s193 = sadd.s32 %s192, 1
    %s194 = scalar_select %p191, %s192, %s193
    %p197 = pneg %p191
    %p198 = scmp.eq.s32.totalorder %s15, 1
    %p199 = por %p197, %p198
    %p200 = scmp.ne.s32.totalorder %s192, %s195
    %p201 = scmp.eq.s32.totalorder %s15, 0
    %p202 = por %p200, %p201
    %p203 = scmp.ne.s32.totalorder %s192, %s195
    %p204 = scmp.eq.s32.totalorder %s20, 1
    %p205 = por %p203, %p204
    %p206 = scmp.ne.s32.totalorder %s195, %s196
    %p207 = scmp.eq.s32.totalorder %s20, 0
    %p208 = por %p206, %p207
    %p209 = scmp.ne.s32.totalorder %s195, %s196
    %p210 = scmp.eq.s32.totalorder %s21, 1
    %p211 = por %p209, %p210
    %p213 = scmp.ne.s32.totalorder %s196, %s212
    %p214 = scmp.eq.s32.totalorder %s21, 0
    %p215 = por %p213, %p214
    %s216 = ssub.s32 %s15, %s22
    %p217 = scmp.eq.s32.totalorder %s216, 0
    %s219 = sadd.s32 %s218, 1
    %s220 = scalar_select %p217, %s218, %s219
    %p223 = pneg %p217
    %p224 = scmp.eq.s32.totalorder %s15, 1
    %p225 = por %p223, %p224
    %p226 = scmp.ne.s32.totalorder %s218, %s221
    %p227 = scmp.eq.s32.totalorder %s15, 0
    %p228 = por %p226, %p227
    %p229 = scmp.ne.s32.totalorder %s218, %s221
    %p230 = scmp.eq.s32.totalorder %s20, 1
    %p231 = por %p229, %p230
    %p232 = scmp.ne.s32.totalorder %s221, %s222
    %p233 = scmp.eq.s32.totalorder %s20, 0
    %p234 = por %p232, %p233
    %p235 = scmp.ne.s32.totalorder %s221, %s222
    %p236 = scmp.eq.s32.totalorder %s21, 1
    %p237 = por %p235, %p236
    %p239 = scmp.ne.s32.totalorder %s222, %s238
    %p240 = scmp.eq.s32.totalorder %s21, 0
    %p241 = por %p239, %p240
    %s243 = sadd.s32 %s242, 1
    %p246 = scmp.eq.s32.totalorder %s15, 1
    %p247 = scmp.ne.s32.totalorder %s242, %s244
    %p248 = scmp.eq.s32.totalorder %s15, 0
    %p249 = por %p247, %p248
    %p250 = scmp.ne.s32.totalorder %s242, %s244
    %p251 = scmp.eq.s32.totalorder %s20, 1
    %p252 = por %p250, %p251
    %p253 = scmp.ne.s32.totalorder %s244, %s245
    %p254 = scmp.eq.s32.totalorder %s20, 0
    %p255 = por %p253, %p254
    %p256 = scmp.ne.s32.totalorder %s244, %s245
    %p257 = scmp.eq.s32.totalorder %s21, 1
    %p258 = por %p256, %p257
    %p260 = scmp.ne.s32.totalorder %s245, %s259
    %p261 = scmp.eq.s32.totalorder %s21, 0
    %p262 = por %p260, %p261
    %p263 = scmp.le.s32.totalorder 1, %s15
    %p264 = scmp.lt.s32.totalorder %s15, 3
    %p265 = pnand %p263, %p264
    %p266 = pneg %p265
    // Predicated region
    $region9: #{weather_transformer.1} parent=5 // pred_check
      _
    $region10: #{weather_transformer.1} parent=5 // pred_check_branch
      %268 = sbr.rel (%p265) target = $region12
    $region11: #{weather_transformer.1} parent=5 // pred_region
      %s269 = ssub.s32 %s15, 1
      // Predicated region
      $region13: #{weather_transformer.1} parent=11 // pred_check
        %p270 = pneg %p36
      $region14: #{weather_transformer.1} parent=11 // pred_check_branch
        %272 = sbr.rel (%p270) target = $region16
      $region15: #{weather_transformer.1} parent=11 // pred_region
        _
      $region16: #{weather_transformer.1} parent=11 // pred_fallthru
        _
      // Predicated region
      $region17: #{weather_transformer.1} parent=11 // pred_check
        %p273 = pneg %p57
      $region18: #{weather_transformer.1} parent=11 // pred_check_branch
        %275 = sbr.rel (%p273) target = $region20
      $region19: #{weather_transformer.1} parent=11 // pred_region
        _
      $region20: #{weather_transformer.1} parent=11 // pred_fallthru
        _
      // Predicated region
      $region21: #{weather_transformer.1} parent=11 // pred_check
        %p276 = pneg %p78
      $region22: #{weather_transformer.1} parent=11 // pred_check_branch
        %278 = sbr.rel (%p276) target = $region24
      $region23: #{weather_transformer.1} parent=11 // pred_region
        _
      $region24: #{weather_transformer.1} parent=11 // pred_fallthru
        _
    $region12: #{weather_transformer.1} parent=5 // pred_fallthru
      _
    %p279 = scmp.lt.s32.totalorder %s15, 2
    // Predicated region
    $region25: #{weather_transformer.1} parent=5 // pred_check
      %p280 = pneg %p279
    $region26: #{weather_transformer.1} parent=5 // pred_check_branch
      %282 = sbr.rel (%p280) target = $region28
    $region27: #{weather_transformer.1} parent=5 // pred_region
      // Predicated region
      $region29: #{weather_transformer.1} parent=27 // pred_check
        %p283 = pneg %p98
      $region30: #{weather_transformer.1} parent=27 // pred_check_branch
        %285 = sbr.rel (%p283) target = $region32
      $region31: #{weather_transformer.1} parent=27 // pred_region
        %p286 = scmp.lt.s32.totalorder %s15, 1
        %s287 = scalar_select %p286, %s15, 1
        %s288 = smul.addr %s287, 4
        %s289 = smul.addr %s288, 4
        %s290 = scalar_lea.vmem %s3, %s289
      $region32: #{weather_transformer.1} parent=27 // pred_fallthru
        _
      // Predicated region
      $region33: #{weather_transformer.1} parent=27 // pred_check
        %p291 = pneg %p124
      $region34: #{weather_transformer.1} parent=27 // pred_check_branch
        %293 = sbr.rel (%p291) target = $region36
      $region35: #{weather_transformer.1} parent=27 // pred_region
        %p294 = scmp.lt.s32.totalorder %s15, 1
        %s295 = scalar_select %p294, %s15, 1
        %s296 = smul.addr %s295, 4
        %s297 = smul.addr %s296, 4
        %s298 = scalar_lea.vmem %s4, %s297
      $region36: #{weather_transformer.1} parent=27 // pred_fallthru
        _
      // Predicated region
      $region37: #{weather_transformer.1} parent=27 // pred_check
        %p299 = pneg %p150
      $region38: #{weather_transformer.1} parent=27 // pred_check_branch
        %301 = sbr.rel (%p299) target = $region40
      $region39: #{weather_transformer.1} parent=27 // pred_region
        %p302 = scmp.lt.s32.totalorder %s15, 1
        %s303 = scalar_select %p302, %s15, 1
        %s304 = smul.addr %s303, 64
        %s305 = smul.addr %s304, 4
        %s306 = scalar_lea.vmem %s5, %s305
      $region40: #{weather_transformer.1} parent=27 // pred_fallthru
        _
      // Predicated region
      $region41: #{weather_transformer.1} parent=27 // pred_check
        %p307 = pneg %p176
      $region42: #{weather_transformer.1} parent=27 // pred_check_branch
        %309 = sbr.rel (%p307) target = $region44
      $region43: #{weather_transformer.1} parent=27 // pred_region
        %p310 = scmp.lt.s32.totalorder %s15, 1
        %s311 = scalar_select %p310, %s15, 1
        %s312 = smul.addr %s311, 256
        %s313 = smul.addr %s312, 4
        %s314 = scalar_lea.vmem %s6, %s313
      $region44: #{weather_transformer.1} parent=27 // pred_fallthru
        _
      // Predicated region
      $region45: #{weather_transformer.1} parent=27 // pred_check
        %p315 = pneg %p202
      $region46: #{weather_transformer.1} parent=27 // pred_check_branch
        %317 = sbr.rel (%p315) target = $region48
      $region47: #{weather_transformer.1} parent=27 // pred_region
        %p318 = scmp.lt.s32.totalorder %s15, 1
        %s319 = scalar_select %p318, %s15, 1
        %s320 = smul.addr %s319, 8
        %s321 = scalar_lea.vmem %s7, %s320
      $region48: #{weather_transformer.1} parent=27 // pred_fallthru
        _
      // Predicated region
      $region49: #{weather_transformer.1} parent=27 // pred_check
        %p322 = pneg %p228
      $region50: #{weather_transformer.1} parent=27 // pred_check_branch
        %324 = sbr.rel (%p322) target = $region52
      $region51: #{weather_transformer.1} parent=27 // pred_region
        %p325 = scmp.lt.s32.totalorder %s15, 1
        %s326 = scalar_select %p325, %s15, 1
        %s327 = smul.addr %s326, 16
        %s328 = scalar_lea.vmem %s8, %s327
      $region52: #{weather_transformer.1} parent=27 // pred_fallthru
        _
    $region28: #{weather_transformer.1} parent=5 // pred_fallthru
      _
    %p329 = scmp.le.s32.totalorder 1, %s15
    %p330 = scmp.lt.s32.totalorder %s15, 3
    %p331 = pnand %p329, %p330
    %p332 = pneg %p331
    // Predicated region
    $region53: #{weather_transformer.1} parent=5 // pred_check
      _
    $region54: #{weather_transformer.1} parent=5 // pred_check_branch
      %334 = sbr.rel (%p331) target = $region56
    $region55: #{weather_transformer.1} parent=5 // pred_region
      %s335 = ssub.s32 %s15, 1
      %p336 = pneg %p36
      %p337 = pneg %p33
      %p338 = pneg %p57
      %p339 = pneg %p54
      %p340 = pneg %p78
      %p341 = pneg %p75
      %p342 = scmp.lt.s32.totalorder %s20, 1
      %s343 = scalar_select %p342, %s20, 1
      %s344 = smul.addr %s343, 4
      %s345 = smul.addr %s344, 4
      %s346 = scalar_lea.vmem %s3, %s345
      %p347 = pneg %p104
      %p348 = pneg %p101
      %p349 = scmp.lt.s32.totalorder %s20, 1
      %s350 = scalar_select %p349, %s20, 1
      %s351 = smul.addr %s350, 4
      %s352 = smul.addr %s351, 4
      %s353 = scalar_lea.vmem %s4, %s352
      %p354 = pneg %p130
      %p355 = pneg %p127
      %p356 = scmp.lt.s32.totalorder %s20, 1
      %s357 = scalar_select %p356, %s20, 1
      %s358 = smul.addr %s357, 64
      %s359 = smul.addr %s358, 4
      %s360 = scalar_lea.vmem %s5, %s359
      %p361 = pneg %p156
      %p362 = pneg %p153
      %p363 = scmp.lt.s32.totalorder %s20, 1
      %s364 = scalar_select %p363, %s20, 1
      %s365 = smul.addr %s364, 256
      %s366 = smul.addr %s365, 4
      %s367 = scalar_lea.vmem %s6, %s366
      %p368 = pneg %p182
      %p369 = pneg %p179
      %p370 = scmp.lt.s32.totalorder %s20, 1
      %s371 = scalar_select %p370, %s20, 1
      %s372 = smul.addr %s371, 8
      %s373 = scalar_lea.vmem %s7, %s372
      %p374 = pneg %p208
      %p375 = pneg %p205
      %p376 = scmp.lt.s32.totalorder %s20, 1
      %s377 = scalar_select %p376, %s20, 1
      %s378 = smul.addr %s377, 16
      %s379 = scalar_lea.vmem %s8, %s378
      %p380 = pneg %p234
      %p381 = pneg %p231
      %p382 = pneg %p255
      %p383 = pneg %p252
      %p384 = scmp.lt.s32.totalorder %s20, 1
      %s385 = scalar_select %p384, %s20, 1
      %s386 = smul.addr %s385, 4
      %s387 = smul.addr %s386, 4
      %s388 = scalar_lea.vmem %s3, %s387
      %p389 = scmp.lt.s32.totalorder %s20, 1
      %s390 = scalar_select %p389, %s20, 1
      %s391 = smul.addr %s390, 4
      %s392 = smul.addr %s391, 4
      %s393 = scalar_lea.vmem %s4, %s392
      %p394 = scmp.lt.s32.totalorder %s20, 1
      %s395 = scalar_select %p394, %s20, 1
      %s396 = smul.addr %s395, 64
      %s397 = smul.addr %s396, 4
      %s398 = scalar_lea.vmem %s5, %s397
      %p399 = scmp.lt.s32.totalorder %s20, 1
      %s400 = scalar_select %p399, %s20, 1
      %s401 = smul.addr %s400, 256
      %s402 = smul.addr %s401, 4
      %s403 = scalar_lea.vmem %s6, %s402
      %p404 = scmp.lt.s32.totalorder %s20, 1
      %s405 = scalar_select %p404, %s20, 1
      %s406 = smul.addr %s405, 8
      %s407 = scalar_lea.vmem %s7, %s406
      %p408 = scmp.lt.s32.totalorder %s20, 1
      %s409 = scalar_select %p408, %s20, 1
      %s410 = smul.addr %s409, 16
      %s411 = scalar_lea.vmem %s8, %s410
      %p413 = scmp.eq.s32.totalorder %s20, 0
      // Predicated region
      $region57: #{weather_transformer.1} parent=55 // pred_check
        %p414 = pneg %p413
      $region58: #{weather_transformer.1} parent=55 // pred_check_branch
        %416 = sbr.rel (%p414) target = $region60
      $region59: #{weather_transformer.1} parent=55 // pred_region
        %v417 = vld [vmem:[%s1] sm:$0xff]
        %v418 = vld [vmem:[%s1 + $0x8] sm:$0xff]
        %v419 = vld [vmem:[%s1 + $0x10] sm:$0xff]
        %v420 = vld [vmem:[%s0] sm:$0xff]
        %v421 = vld [vmem:[%s0 + $0x8] sm:$0xff]
        %423 = vset.pattern.permute.xlu0 0
        %424 = vperm.xlu0 %423, %v420
        %v425 = vpop.permute.xlu0 %424
        %428 = vset.pattern.permute.xlu0 0
        %429 = vperm.xlu0 %428, %v421
        %v430 = vpop.permute.xlu0 %429
        %v432 = vperm.slane %v419, 0
        %v433 = vmul.f32 %v425, %v432
        %v434 = vmul.f32 %v430, %v432
        %435 = vset.pattern.permute.xlu0 1
        %436 = vperm.xlu0 %435, %v420
        %v437 = vpop.permute.xlu0 %436
        %439 = vset.pattern.permute.xlu0 1
        %440 = vperm.xlu0 %439, %v421
        %v441 = vpop.permute.xlu0 %440
        %v443 = vperm.slane %v419, 1
        %v444 = vmul.f32 %v437, %v443
        %v445 = vmul.f32 %v441, %v443
        %v446 = vadd.f32 %v433, %v444
        %v447 = vadd.f32 %v434, %v445
        %448 = vset.pattern.permute.xlu0 2
        %449 = vperm.xlu0 %448, %v420
        %v450 = vpop.permute.xlu0 %449
        %452 = vset.pattern.permute.xlu0 2
        %453 = vperm.xlu0 %452, %v421
        %v454 = vpop.permute.xlu0 %453
        %v456 = vperm.slane %v419, 2
        %v457 = vmul.f32 %v450, %v456
        %v458 = vmul.f32 %v454, %v456
        %v459 = vadd.f32 %v446, %v457
        %v460 = vadd.f32 %v447, %v458
        %461 = vset.pattern.permute.xlu0 3
        %462 = vperm.xlu0 %461, %v420
        %v463 = vpop.permute.xlu0 %462
        %465 = vset.pattern.permute.xlu0 3
        %466 = vperm.xlu0 %465, %v421
        %v467 = vpop.permute.xlu0 %466
        %v469 = vperm.slane %v419, 3
        %v470 = vmul.f32 %v463, %v469
        %v471 = vmul.f32 %v467, %v469
        %v472 = vadd.f32 %v459, %v470
        %v473 = vadd.f32 %v460, %v471
        %v474 = vperm.slane %v419, 4
        %v475 = vadd.f32 %v472, %v474
        %v476 = vadd.f32 %v473, %v474
        %v477 = vadd.f32 %v475, %v417
        %v478 = vadd.f32 %v476, %v418
        %vm479 = vcmask 261120
        %480 = vst.msk [vmem:[#allocation2] sm:$0xff] %vm479, %v477
        %481 = vst.msk [vmem:[#allocation2 + $0x8] sm:$0xff] %vm479, %v478
      $region60: #{weather_transformer.1} parent=55 // pred_fallthru
        _
      %v482 = vld [vmem:[%s407] sm:$0xff]
      %v483 = vld [vmem:[#allocation2] sm:$0xff]
      %v484 = vld [vmem:[#allocation2 + $0x8] sm:$0xff]
      %v485 = vpack.c.bf16 %v484, %v483
      %v486 = vld [vmem:[%s388] sm:$0xf]
      %v487 = vld [vmem:[%s388 + $0x4] sm:$0xf]
      %v488 = vld [vmem:[%s388 + $0x8] sm:$0xf]
      %v489 = vld [vmem:[%s388 + $0xc] sm:$0xf]
      %v490 = vperm.slane %v482, 0
      %v495 = vunpack.c.l.b16 %v486
      %v496 = vunpack.c.l.b16 %v487
      %v497 = vunpack.c.l.b16 %v488
      %v498 = vunpack.c.l.b16 %v489
      %v499 = vpack.c.b16 %v496, %v495
      %v500 = vpack.c.b16 %v498, %v497
      %vm503 = vcmask 261120
      %v505 = vsel %vm503, %v485, 0
      %507 = vmatpush.bf16.msra.mxu0 0
      %508 = vmatpush.bf16.msra.mxu0 0
      %509 = vmatpush.bf16.msra.mxu0 0
      %510 = vmatpush.bf16.msra.mxu0 0
      %511 = vmatpush.bf16.msra.mxu0 0
      %512 = vmatpush.bf16.msra.mxu0 0
      %513 = vmatpush.bf16.msra.mxu0 %v500
      %514 = vmatpush.bf16.msra.mxu0 %v499
      %515 = vmatmul.bf16.gmra.mxu0 %v505
      %v516 = vpop.f32.mrf.mxu0
      %v517 = vadd.f32 %v490, %v516
      %v518 = vpop.f32.mrf.mxu0
      %v519 = vadd.f32 %v490, %v518
      %520 = vdwg.mxu0
      %v521 = vmul.f32 %v517, 0.35355338
      %v522 = vmul.f32 %v519, 0.35355338
      %525 = vrot.lane.b32.xlu0 %v517, 96
      %v526 = vpop.permute.xlu0 %525
      %527 = vrot.lane.b32.xlu0 %v519, 96
      %v528 = vpop.permute.xlu0 %527
      %531 = vrot.lane.b32.xlu0 %v517, 64
      %v532 = vpop.permute.xlu0 %531
      %533 = vrot.lane.b32.xlu0 %v519, 64
      %v534 = vpop.permute.xlu0 %533
      %v537 = vld [vmem:[%s2] sm:$0xff]
      %v538 = vld [vmem:[%s2 + $0x8] sm:$0xff]
      %v539 = vld [vmem:[%s2 + $0x10] sm:$0xff]
      %v540 = vld [vmem:[%s2 + $0x18] sm:$0xff]
      %v541 = vmul.f32 %v521, %v526
      %v542 = vmul.f32 %v522, %v528
      %v544 = vsel %vm503, %v541, 0
      %v547 = vsel %vm503, %v542, 0
      %549 = vmatpush.msra.mxu0 0.0
      %550 = vmatpush.msra.mxu0 0.0
      %551 = vmatpush.msra.mxu0 0.0
      %552 = vmatpush.msra.mxu0 0.0
      %553 = vmatpush.msra.mxu0 0.0
      %554 = vmatpush.msra.mxu0 0.0
      %555 = vmatpush.msra.mxu0 0.0
      %556 = vmatpush.msra.mxu0 0.0
      %557 = vmatpush.msra.mxu0 0.0
      %558 = vmatpush.msra.mxu0 0.0
      %559 = vmatpush.msra.mxu0 0.0
      %560 = vmatpush.msra.mxu0 0.0
      %561 = vmatpush.msra.mxu0 %v540
      %562 = vmatpush.msra.mxu0 %v539
      %563 = vmatpush.msra.mxu0 %v538
      %564 = vmatpush.msra.mxu0 %v537
      %565 = vmatmul.f32.gmra.mxu0 %v544
      %v566 = vpop.f32.mrf.mxu0
      %v567 = vadd.f32 0.0, %v566
      %568 = vmatmul.f32.gmra.mxu0 %v547
      %v569 = vpop.f32.mrf.mxu0
      %v570 = vadd.f32 0.0, %v569
      %571 = vdwg.mxu0
      %v572 = vmul.f32 %v521, %v528
      %v573 = vmul.f32 %v522, %v526
      %v575 = vsel %vm503, %v572, 0
      %v578 = vsel %vm503, %v573, 0
      %580 = vmatpush.msra.mxu0 0.0
      %581 = vmatpush.msra.mxu0 0.0
      %582 = vmatpush.msra.mxu0 0.0
      %583 = vmatpush.msra.mxu0 0.0
      %584 = vmatpush.msra.mxu0 0.0
      %585 = vmatpush.msra.mxu0 0.0
      %586 = vmatpush.msra.mxu0 0.0
      %587 = vmatpush.msra.mxu0 0.0
      %588 = vmatpush.msra.mxu0 0.0
      %589 = vmatpush.msra.mxu0 0.0
      %590 = vmatpush.msra.mxu0 0.0
      %591 = vmatpush.msra.mxu0 0.0
      %592 = vmatpush.msra.mxu0 %v540
      %593 = vmatpush.msra.mxu0 %v539
      %594 = vmatpush.msra.mxu0 %v538
      %595 = vmatpush.msra.mxu0 %v537
      %596 = vmatmul.f32.gmra.mxu0 %v575
      %v597 = vpop.f32.mrf.mxu0
      %v598 = vadd.f32 0.0, %v597
      %599 = vmatmul.f32.gmra.mxu0 %v578
      %v600 = vpop.f32.mrf.mxu0
      %v601 = vadd.f32 0.0, %v600
      %602 = vdwg.mxu0
      %v603 = vmax.f32 %v567, %v598
      %v604 = vmax.f32 %v570, %v601
      %v605 = vsub.f32 %v567, %v603
      %v606 = vsub.f32 %v570, %v604
      %v607 = vmul.f32 %v605, 1.442695
      %v608 = vpow.pop %v607
      %v609 = vmul.f32 %v606, 1.442695
      %v610 = vpow.pop %v609
      %v611 = vsub.f32 %v598, %v603
      %v612 = vsub.f32 %v601, %v604
      %v613 = vmul.f32 %v611, 1.442695
      %v614 = vpow.pop %v613
      %v615 = vmul.f32 %v612, 1.442695
      %v616 = vpow.pop %v615
      %v617 = vadd.f32 %v608, %v614
      %v618 = vadd.f32 %v610, %v616
      %v619 = vrcp.pop %v617
      %v620 = vrcp.pop %v618
      %v621 = vmul.f32 %v608, %v619
      %v622 = vmul.f32 %v610, %v620
      %v623 = vmul.f32 %v621, %v532
      %v624 = vmul.f32 %v622, %v534
      %v625 = vmul.f32 %v614, %v619
      %v626 = vmul.f32 %v616, %v620
      %v627 = vmul.f32 %v625, %v534
      %v628 = vmul.f32 %v626, %v532
      %v629 = vadd.f32 %v623, %v627
      %v630 = vadd.f32 %v624, %v628
      %v631 = vpack.c.bf16 %v630, %v629
      %v632 = vld [vmem:[%s393] sm:$0xf]
      %v633 = vld [vmem:[%s393 + $0x4] sm:$0xf]
      %v634 = vld [vmem:[%s393 + $0x8] sm:$0xf]
      %v635 = vld [vmem:[%s393 + $0xc] sm:$0xf]
      %v636 = vperm.slane %v482, 1
      %v641 = vunpack.c.l.b16 %v632
      %v642 = vunpack.c.l.b16 %v633
      %v643 = vunpack.c.l.b16 %v634
      %v644 = vunpack.c.l.b16 %v635
      %v645 = vpack.c.b16 %v642, %v641
      %v646 = vpack.c.b16 %v644, %v643
      %v650 = vsel %vm503, %v631, 0
      %652 = vmatpush.bf16.msra.mxu0 0
      %653 = vmatpush.bf16.msra.mxu0 0
      %654 = vmatpush.bf16.msra.mxu0 0
      %655 = vmatpush.bf16.msra.mxu0 0
      %656 = vmatpush.bf16.msra.mxu0 0
      %657 = vmatpush.bf16.msra.mxu0 0
      %658 = vmatpush.bf16.msra.mxu0 %v646
      %659 = vmatpush.bf16.msra.mxu0 %v645
      %660 = vmatmul.bf16.gmra.mxu0 %v650
      %v661 = vpop.f32.mrf.mxu0
      %v662 = vadd.f32 %v636, %v661
      %v663 = vpop.f32.mrf.mxu0
      %v664 = vadd.f32 %v636, %v663
      %665 = vdwg.mxu0
      %v666 = vadd.f32 %v483, %v662
      %v667 = vadd.f32 %v484, %v664
      %v668 = vsel %vm503, %v666, 0.0
      %669 = vadd.xlane.f32.xlu0 %v668
      %v670 = vpop.xlane.xlu0 %669
      %v671 = vsel %vm503, %v667, 0.0
      %672 = vadd.xlane.f32.xlu0 %v671
      %v673 = vpop.xlane.xlu0 %672
      %v674 = vrcp.pop 32.0
      %v675 = vmul.f32 32.0, %v674
      %v676 = vsub.f32 1.0, %v675
      %v677 = vmul.f32 %v674, %v676
      %v678 = vadd.f32 %v674, %v677
      %vm679 = vweird.f32 %v674
      %v680 = vsel %vm679, %v674, %v678
      %v681 = vmul.f32 %v670, %v680
      %v682 = vmul.f32 %v673, %v680
      %v683 = vsub.f32 %v666, %v681
      %v684 = vsub.f32 %v667, %v682
      %v685 = vmul.f32 %v683, %v683
      %v686 = vmul.f32 %v684, %v684
      %v687 = vsel %vm503, %v685, 0.0
      %688 = vadd.xlane.f32.xlu0 %v687
      %v689 = vpop.xlane.xlu0 %688
      %v690 = vsel %vm503, %v686, 0.0
      %691 = vadd.xlane.f32.xlu0 %v690
      %v692 = vpop.xlane.xlu0 %691
      %v693 = vmul.f32 %v689, %v680
      %v694 = vmul.f32 %v692, %v680
      %v695 = vadd.f32 %v693, 1e-05
      %v696 = vadd.f32 %v694, 1e-05
      %v697 = vrsqrt.pop %v695
      %v698 = vmul.f32 %v697, %v695
      %v699 = vmul.f32 %v698, %v697
      %v700 = vmul.f32 0.5, %v699
      %v701 = vsub.f32 1.5, %v700
      %v702 = vmul.f32 %v697, %v701
      %vm703 = vweird.f32 %v695
      %vm704 = vweird.f32 %v697
      %vm705 = vmor %vm703, %vm704
      %v706 = vsel %vm705, %v697, %v702
      %v707 = vrsqrt.pop %v696
      %v708 = vmul.f32 %v707, %v696
      %v709 = vmul.f32 %v708, %v707
      %v710 = vmul.f32 0.5, %v709
      %v711 = vsub.f32 1.5, %v710
      %v712 = vmul.f32 %v707, %v711
      %vm713 = vweird.f32 %v696
      %vm714 = vweird.f32 %v707
      %vm715 = vmor %vm713, %vm714
      %v716 = vsel %vm715, %v707, %v712
      %v717 = vmul.f32 %v683, %v706
      %v718 = vmul.f32 %v684, %v716
      %v719 = vperm.slane %v482, 2
      %v720 = vmul.f32 %v717, %v719
      %v721 = vmul.f32 %v718, %v719
      %v722 = vperm.slane %v482, 3
      %v723 = vadd.f32 %v720, %v722
      %v724 = vadd.f32 %v721, %v722
      %v725 = vpack.c.bf16 %v724, %v723
      %v726 = vld [vmem:[%s398] sm:$0xff]
      %v727 = vld [vmem:[%s398 + $0x8] sm:$0xff]
      %v728 = vld [vmem:[%s398 + $0x10] sm:$0xff]
      %v729 = vld [vmem:[%s398 + $0x18] sm:$0xff]
      %v730 = vld [vmem:[%s398 + $0x20] sm:$0xff]
      %v731 = vld [vmem:[%s398 + $0x28] sm:$0xff]
      %v732 = vld [vmem:[%s398 + $0x30] sm:$0xff]
      %v733 = vld [vmem:[%s398 + $0x38] sm:$0xff]
      %v734 = vld [vmem:[%s398 + $0x40] sm:$0xff]
      %v735 = vld [vmem:[%s398 + $0x48] sm:$0xff]
      %v736 = vld [vmem:[%s398 + $0x50] sm:$0xff]
      %v737 = vld [vmem:[%s398 + $0x58] sm:$0xff]
      %v738 = vld [vmem:[%s398 + $0x60] sm:$0xff]
      %v739 = vld [vmem:[%s398 + $0x68] sm:$0xff]
      %v740 = vld [vmem:[%s398 + $0x70] sm:$0xff]
      %v741 = vld [vmem:[%s398 + $0x78] sm:$0xff]
      %v742 = vld [vmem:[%s398 + $0x80] sm:$0xff]
      %v743 = vld [vmem:[%s398 + $0x88] sm:$0xff]
      %v744 = vld [vmem:[%s398 + $0x90] sm:$0xff]
      %v745 = vld [vmem:[%s398 + $0x98] sm:$0xff]
      %v746 = vld [vmem:[%s398 + $0xa0] sm:$0xff]
      %v747 = vld [vmem:[%s398 + $0xa8] sm:$0xff]
      %v748 = vld [vmem:[%s398 + $0xb0] sm:$0xff]
      %v749 = vld [vmem:[%s398 + $0xb8] sm:$0xff]
      %v750 = vld [vmem:[%s398 + $0xc0] sm:$0xff]
      %v751 = vld [vmem:[%s398 + $0xc8] sm:$0xff]
      %v752 = vld [vmem:[%s398 + $0xd0] sm:$0xff]
      %v753 = vld [vmem:[%s398 + $0xd8] sm:$0xff]
      %v754 = vld [vmem:[%s398 + $0xe0] sm:$0xff]
      %v755 = vld [vmem:[%s398 + $0xe8] sm:$0xff]
      %v756 = vld [vmem:[%s398 + $0xf0] sm:$0xff]
      %v757 = vld [vmem:[%s398 + $0xf8] sm:$0xff]
      %v758 = vld [vmem:[%s411] sm:$0xff]
      %v759 = vld [vmem:[%s411 + $0x8] sm:$0xff]
      %v762 = vperm.slane %v758, 0
      %v763 = vperm.slane %v758, 1
      %v764 = vperm.slane %v758, 2
      %v765 = vperm.slane %v758, 3
      %v766 = vperm.slane %v758, 4
      %v767 = vperm.slane %v758, 5
      %v768 = vperm.slane %v758, 6
      %v769 = vperm.slane %v758, 7
      %v770 = vperm.slane %v759, 0
      %v771 = vperm.slane %v759, 1
      %v772 = vperm.slane %v759, 2
      %v773 = vperm.slane %v759, 3
      %v774 = vperm.slane %v759, 4
      %v775 = vperm.slane %v759, 5
      %v776 = vperm.slane %v759, 6
      %v777 = vperm.slane %v759, 7
      %v826 = vunpack.c.l.b16 %v726
      %v827 = vunpack.c.h.b16 %v726
      %v828 = vunpack.c.l.b16 %v727
      %v829 = vunpack.c.h.b16 %v727
      %v830 = vunpack.c.l.b16 %v728
      %v831 = vunpack.c.h.b16 %v728
      %v832 = vunpack.c.l.b16 %v729
      %v833 = vunpack.c.h.b16 %v729
      %v834 = vunpack.c.l.b16 %v730
      %v835 = vunpack.c.h.b16 %v730
      %v836 = vunpack.c.l.b16 %v731
      %v837 = vunpack.c.h.b16 %v731
      %v838 = vunpack.c.l.b16 %v732
      %v839 = vunpack.c.h.b16 %v732
      %v840 = vunpack.c.l.b16 %v733
      %v841 = vunpack.c.h.b16 %v733
      %v842 = vunpack.c.l.b16 %v734
      %v843 = vunpack.c.h.b16 %v734
      %v844 = vunpack.c.l.b16 %v735
      %v845 = vunpack.c.h.b16 %v735
      %v846 = vunpack.c.l.b16 %v736
      %v847 = vunpack.c.h.b16 %v736
      %v848 = vunpack.c.l.b16 %v737
      %v849 = vunpack.c.h.b16 %v737
      %v850 = vunpack.c.l.b16 %v738
      %v851 = vunpack.c.h.b16 %v738
      %v852 = vunpack.c.l.b16 %v739
      %v853 = vunpack.c.h.b16 %v739
      %v854 = vunpack.c.l.b16 %v740
      %v855 = vunpack.c.h.b16 %v740
      %v856 = vunpack.c.l.b16 %v741
      %v857 = vunpack.c.h.b16 %v741
      %v858 = vunpack.c.l.b16 %v742
      %v859 = vunpack.c.h.b16 %v742
      %v860 = vunpack.c.l.b16 %v743
      %v861 = vunpack.c.h.b16 %v743
      %v862 = vunpack.c.l.b16 %v744
      %v863 = vunpack.c.h.b16 %v744
      %v864 = vunpack.c.l.b16 %v745
      %v865 = vunpack.c.h.b16 %v745
      %v866 = vunpack.c.l.b16 %v746
      %v867 = vunpack.c.h.b16 %v746
      %v868 = vunpack.c.l.b16 %v747
      %v869 = vunpack.c.h.b16 %v747
      %v870 = vunpack.c.l.b16 %v748
      %v871 = vunpack.c.h.b16 %v748
      %v872 = vunpack.c.l.b16 %v749
      %v873 = vunpack.c.h.b16 %v749
      %v874 = vunpack.c.l.b16 %v750
      %v875 = vunpack.c.h.b16 %v750
      %v876 = vunpack.c.l.b16 %v751
      %v877 = vunpack.c.h.b16 %v751
      %v878 = vunpack.c.l.b16 %v752
      %v879 = vunpack.c.h.b16 %v752
      %v880 = vunpack.c.l.b16 %v753
      %v881 = vunpack.c.h.b16 %v753
      %v882 = vunpack.c.l.b16 %v754
      %v883 = vunpack.c.h.b16 %v754
      %v884 = vunpack.c.l.b16 %v755
      %v885 = vunpack.c.h.b16 %v755
      %v886 = vunpack.c.l.b16 %v756
      %v887 = vunpack.c.h.b16 %v756
      %v888 = vunpack.c.l.b16 %v757
      %v889 = vunpack.c.h.b16 %v757
      %v890 = vpack.c.b16 %v842, %v826
      %v891 = vpack.c.b16 %v843, %v827
      %v892 = vpack.c.b16 %v844, %v828
      %v893 = vpack.c.b16 %v845, %v829
      %v894 = vpack.c.b16 %v846, %v830
      %v895 = vpack.c.b16 %v847, %v831
      %v896 = vpack.c.b16 %v848, %v832
      %v897 = vpack.c.b16 %v849, %v833
      %v898 = vpack.c.b16 %v850, %v834
      %v899 = vpack.c.b16 %v851, %v835
      %v900 = vpack.c.b16 %v852, %v836
      %v901 = vpack.c.b16 %v853, %v837
      %v902 = vpack.c.b16 %v854, %v838
      %v903 = vpack.c.b16 %v855, %v839
      %v904 = vpack.c.b16 %v856, %v840
      %v905 = vpack.c.b16 %v857, %v841
      %v906 = vpack.c.b16 %v874, %v858
      %v907 = vpack.c.b16 %v875, %v859
      %v908 = vpack.c.b16 %v876, %v860
      %v909 = vpack.c.b16 %v877, %v861
      %v910 = vpack.c.b16 %v878, %v862
      %v911 = vpack.c.b16 %v879, %v863
      %v912 = vpack.c.b16 %v880, %v864
      %v913 = vpack.c.b16 %v881, %v865
      %v914 = vpack.c.b16 %v882, %v866
      %v915 = vpack.c.b16 %v883, %v867
      %v916 = vpack.c.b16 %v884, %v868
      %v917 = vpack.c.b16 %v885, %v869
      %v918 = vpack.c.b16 %v886, %v870
      %v919 = vpack.c.b16 %v887, %v871
      %v920 = vpack.c.b16 %v888, %v872
      %v921 = vpack.c.b16 %v889, %v873
      %v955 = vsel %vm503, %v725, 0
      %957 = vmatpush.bf16.msra.mxu0 0
      %958 = vmatpush.bf16.msra.mxu0 0
      %959 = vmatpush.bf16.msra.mxu0 0
      %960 = vmatpush.bf16.msra.mxu0 0
      %961 = vmatpush.bf16.msra.mxu0 0
      %962 = vmatpush.bf16.msra.mxu0 0
      %963 = vmatpush.bf16.msra.mxu0 %v906
      %964 = vmatpush.bf16.msra.mxu0 %v890
      %965 = vmatmul.bf16.gmra.mxu0 %v955
      %v966 = vpop.f32.mrf.mxu0
      %v967 = vadd.f32 %v762, %v966
      %v968 = vpop.f32.mrf.mxu0
      %v969 = vadd.f32 %v762, %v968
      %970 = vdwg.mxu0
      %971 = vmatpush.bf16.msra.mxu0 0
      %972 = vmatpush.bf16.msra.mxu0 0
      %973 = vmatpush.bf16.msra.mxu0 0
      %974 = vmatpush.bf16.msra.mxu0 0
      %975 = vmatpush.bf16.msra.mxu0 0
      %976 = vmatpush.bf16.msra.mxu0 0
      %977 = vmatpush.bf16.msra.mxu0 %v907
      %978 = vmatpush.bf16.msra.mxu0 %v891
      %979 = vmatmul.bf16.gmra.mxu0 %v955
      %v980 = vpop.f32.mrf.mxu0
      %v981 = vadd.f32 %v763, %v980
      %v982 = vpop.f32.mrf.mxu0
      %v983 = vadd.f32 %v763, %v982
      %984 = vdwg.mxu0
      %985 = vmatpush.bf16.msra.mxu0 0
      %986 = vmatpush.bf16.msra.mxu0 0
      %987 = vmatpush.bf16.msra.mxu0 0
      %988 = vmatpush.bf16.msra.mxu0 0
      %989 = vmatpush.bf16.msra.mxu0 0
      %990 = vmatpush.bf16.msra.mxu0 0
      %991 = vmatpush.bf16.msra.mxu0 %v908
      %992 = vmatpush.bf16.msra.mxu0 %v892
      %993 = vmatmul.bf16.gmra.mxu0 %v955
      %v994 = vpop.f32.mrf.mxu0
      %v995 = vadd.f32 %v764, %v994
      %v996 = vpop.f32.mrf.mxu0
      %v997 = vadd.f32 %v764, %v996
      %998 = vdwg.mxu0
      %999 = vmatpush.bf16.msra.mxu0 0
      %1000 = vmatpush.bf16.msra.mxu0 0
      %1001 = vmatpush.bf16.msra.mxu0 0
      %1002 = vmatpush.bf16.msra.mxu0 0
      %1003 = vmatpush.bf16.msra.mxu0 0
      %1004 = vmatpush.bf16.msra.mxu0 0
      %1005 = vmatpush.bf16.msra.mxu0 %v909
      %1006 = vmatpush.bf16.msra.mxu0 %v893
      %1007 = vmatmul.bf16.gmra.mxu0 %v955
      %v1008 = vpop.f32.mrf.mxu0
      %v1009 = vadd.f32 %v765, %v1008
      %v1010 = vpop.f32.mrf.mxu0
      %v1011 = vadd.f32 %v765, %v1010
      %1012 = vdwg.mxu0
      %1013 = vmatpush.bf16.msra.mxu0 0
      %1014 = vmatpush.bf16.msra.mxu0 0
      %1015 = vmatpush.bf16.msra.mxu0 0
      %1016 = vmatpush.bf16.msra.mxu0 0
      %1017 = vmatpush.bf16.msra.mxu0 0
      %1018 = vmatpush.bf16.msra.mxu0 0
      %1019 = vmatpush.bf16.msra.mxu0 %v910
      %1020 = vmatpush.bf16.msra.mxu0 %v894
      %1021 = vmatmul.bf16.gmra.mxu0 %v955
      %v1022 = vpop.f32.mrf.mxu0
      %v1023 = vadd.f32 %v766, %v1022
      %v1024 = vpop.f32.mrf.mxu0
      %v1025 = vadd.f32 %v766, %v1024
      %1026 = vdwg.mxu0
      %1027 = vmatpush.bf16.msra.mxu0 0
      %1028 = vmatpush.bf16.msra.mxu0 0
      %1029 = vmatpush.bf16.msra.mxu0 0
      %1030 = vmatpush.bf16.msra.mxu0 0
      %1031 = vmatpush.bf16.msra.mxu0 0
      %1032 = vmatpush.bf16.msra.mxu0 0
      %1033 = vmatpush.bf16.msra.mxu0 %v911
      %1034 = vmatpush.bf16.msra.mxu0 %v895
      %1035 = vmatmul.bf16.gmra.mxu0 %v955
      %v1036 = vpop.f32.mrf.mxu0
      %v1037 = vadd.f32 %v767, %v1036
      %v1038 = vpop.f32.mrf.mxu0
      %v1039 = vadd.f32 %v767, %v1038
      %1040 = vdwg.mxu0
      %1041 = vmatpush.bf16.msra.mxu0 0
      %1042 = vmatpush.bf16.msra.mxu0 0
      %1043 = vmatpush.bf16.msra.mxu0 0
      %1044 = vmatpush.bf16.msra.mxu0 0
      %1045 = vmatpush.bf16.msra.mxu0 0
      %1046 = vmatpush.bf16.msra.mxu0 0
      %1047 = vmatpush.bf16.msra.mxu0 %v912
      %1048 = vmatpush.bf16.msra.mxu0 %v896
      %1049 = vmatmul.bf16.gmra.mxu0 %v955
      %v1050 = vpop.f32.mrf.mxu0
      %v1051 = vadd.f32 %v768, %v1050
      %v1052 = vpop.f32.mrf.mxu0
      %v1053 = vadd.f32 %v768, %v1052
      %1054 = vdwg.mxu0
      %1055 = vmatpush.bf16.msra.mxu0 0
      %1056 = vmatpush.bf16.msra.mxu0 0
      %1057 = vmatpush.bf16.msra.mxu0 0
      %1058 = vmatpush.bf16.msra.mxu0 0
      %1059 = vmatpush.bf16.msra.mxu0 0
      %1060 = vmatpush.bf16.msra.mxu0 0
      %1061 = vmatpush.bf16.msra.mxu0 %v913
      %1062 = vmatpush.bf16.msra.mxu0 %v897
      %1063 = vmatmul.bf16.gmra.mxu0 %v955
      %v1064 = vpop.f32.mrf.mxu0
      %v1065 = vadd.f32 %v769, %v1064
      %v1066 = vpop.f32.mrf.mxu0
      %v1067 = vadd.f32 %v769, %v1066
      %1068 = vdwg.mxu0
      %1069 = vmatpush.bf16.msra.mxu0 0
      %1070 = vmatpush.bf16.msra.mxu0 0
      %1071 = vmatpush.bf16.msra.mxu0 0
      %1072 = vmatpush.bf16.msra.mxu0 0
      %1073 = vmatpush.bf16.msra.mxu0 0
      %1074 = vmatpush.bf16.msra.mxu0 0
      %1075 = vmatpush.bf16.msra.mxu0 %v914
      %1076 = vmatpush.bf16.msra.mxu0 %v898
      %1077 = vmatmul.bf16.gmra.mxu0 %v955
      %v1078 = vpop.f32.mrf.mxu0
      %v1079 = vadd.f32 %v770, %v1078
      %v1080 = vpop.f32.mrf.mxu0
      %v1081 = vadd.f32 %v770, %v1080
      %1082 = vdwg.mxu0
      %1083 = vmatpush.bf16.msra.mxu0 0
      %1084 = vmatpush.bf16.msra.mxu0 0
      %1085 = vmatpush.bf16.msra.mxu0 0
      %1086 = vmatpush.bf16.msra.mxu0 0
      %1087 = vmatpush.bf16.msra.mxu0 0
      %1088 = vmatpush.bf16.msra.mxu0 0
      %1089 = vmatpush.bf16.msra.mxu0 %v915
      %1090 = vmatpush.bf16.msra.mxu0 %v899
      %1091 = vmatmul.bf16.gmra.mxu0 %v955
      %v1092 = vpop.f32.mrf.mxu0
      %v1093 = vadd.f32 %v771, %v1092
      %v1094 = vpop.f32.mrf.mxu0
      %v1095 = vadd.f32 %v771, %v1094
      %1096 = vdwg.mxu0
      %1097 = vmatpush.bf16.msra.mxu0 0
      %1098 = vmatpush.bf16.msra.mxu0 0
      %1099 = vmatpush.bf16.msra.mxu0 0
      %1100 = vmatpush.bf16.msra.mxu0 0
      %1101 = vmatpush.bf16.msra.mxu0 0
      %1102 = vmatpush.bf16.msra.mxu0 0
      %1103 = vmatpush.bf16.msra.mxu0 %v916
      %1104 = vmatpush.bf16.msra.mxu0 %v900
      %1105 = vmatmul.bf16.gmra.mxu0 %v955
      %v1106 = vpop.f32.mrf.mxu0
      %v1107 = vadd.f32 %v772, %v1106
      %v1108 = vpop.f32.mrf.mxu0
      %v1109 = vadd.f32 %v772, %v1108
      %1110 = vdwg.mxu0
      %1111 = vmatpush.bf16.msra.mxu0 0
      %1112 = vmatpush.bf16.msra.mxu0 0
      %1113 = vmatpush.bf16.msra.mxu0 0
      %1114 = vmatpush.bf16.msra.mxu0 0
      %1115 = vmatpush.bf16.msra.mxu0 0
      %1116 = vmatpush.bf16.msra.mxu0 0
      %1117 = vmatpush.bf16.msra.mxu0 %v917
      %1118 = vmatpush.bf16.msra.mxu0 %v901
      %1119 = vmatmul.bf16.gmra.mxu0 %v955
      %v1120 = vpop.f32.mrf.mxu0
      %v1121 = vadd.f32 %v773, %v1120
      %v1122 = vpop.f32.mrf.mxu0
      %v1123 = vadd.f32 %v773, %v1122
      %1124 = vdwg.mxu0
      %1125 = vmatpush.bf16.msra.mxu0 0
      %1126 = vmatpush.bf16.msra.mxu0 0
      %1127 = vmatpush.bf16.msra.mxu0 0
      %1128 = vmatpush.bf16.msra.mxu0 0
      %1129 = vmatpush.bf16.msra.mxu0 0
      %1130 = vmatpush.bf16.msra.mxu0 0
      %1131 = vmatpush.bf16.msra.mxu0 %v918
      %1132 = vmatpush.bf16.msra.mxu0 %v902
      %1133 = vmatmul.bf16.gmra.mxu0 %v955
      %v1134 = vpop.f32.mrf.mxu0
      %v1135 = vadd.f32 %v774, %v1134
      %v1136 = vpop.f32.mrf.mxu0
      %v1137 = vadd.f32 %v774, %v1136
      %1138 = vdwg.mxu0
      %1139 = vmatpush.bf16.msra.mxu0 0
      %1140 = vmatpush.bf16.msra.mxu0 0
      %1141 = vmatpush.bf16.msra.mxu0 0
      %1142 = vmatpush.bf16.msra.mxu0 0
      %1143 = vmatpush.bf16.msra.mxu0 0
      %1144 = vmatpush.bf16.msra.mxu0 0
      %1145 = vmatpush.bf16.msra.mxu0 %v919
      %1146 = vmatpush.bf16.msra.mxu0 %v903
      %1147 = vmatmul.bf16.gmra.mxu0 %v955
      %v1148 = vpop.f32.mrf.mxu0
      %v1149 = vadd.f32 %v775, %v1148
      %v1150 = vpop.f32.mrf.mxu0
      %v1151 = vadd.f32 %v775, %v1150
      %1152 = vdwg.mxu0
      %1153 = vmatpush.bf16.msra.mxu0 0
      %1154 = vmatpush.bf16.msra.mxu0 0
      %1155 = vmatpush.bf16.msra.mxu0 0
      %1156 = vmatpush.bf16.msra.mxu0 0
      %1157 = vmatpush.bf16.msra.mxu0 0
      %1158 = vmatpush.bf16.msra.mxu0 0
      %1159 = vmatpush.bf16.msra.mxu0 %v920
      %1160 = vmatpush.bf16.msra.mxu0 %v904
      %1161 = vmatmul.bf16.gmra.mxu0 %v955
      %v1162 = vpop.f32.mrf.mxu0
      %v1163 = vadd.f32 %v776, %v1162
      %v1164 = vpop.f32.mrf.mxu0
      %v1165 = vadd.f32 %v776, %v1164
      %1166 = vdwg.mxu0
      %1167 = vmatpush.bf16.msra.mxu0 0
      %1168 = vmatpush.bf16.msra.mxu0 0
      %1169 = vmatpush.bf16.msra.mxu0 0
      %1170 = vmatpush.bf16.msra.mxu0 0
      %1171 = vmatpush.bf16.msra.mxu0 0
      %1172 = vmatpush.bf16.msra.mxu0 0
      %1173 = vmatpush.bf16.msra.mxu0 %v921
      %1174 = vmatpush.bf16.msra.mxu0 %v905
      %1175 = vmatmul.bf16.gmra.mxu0 %v955
      %v1176 = vpop.f32.mrf.mxu0
      %v1177 = vadd.f32 %v777, %v1176
      %v1178 = vpop.f32.mrf.mxu0
      %v1179 = vadd.f32 %v777, %v1178
      %1180 = vdwg.mxu0
      %v1181 = vmax.f32 %v967, 0.0
      %v1182 = vmax.f32 %v981, 0.0
      %v1183 = vmax.f32 %v995, 0.0
      %v1184 = vmax.f32 %v1009, 0.0
      %v1185 = vmax.f32 %v1023, 0.0
      %v1186 = vmax.f32 %v1037, 0.0
      %v1187 = vmax.f32 %v1051, 0.0
      %v1188 = vmax.f32 %v1065, 0.0
      %v1189 = vmax.f32 %v1079, 0.0
      %v1190 = vmax.f32 %v1093, 0.0
      %v1191 = vmax.f32 %v1107, 0.0
      %v1192 = vmax.f32 %v1121, 0.0
      %v1193 = vmax.f32 %v1135, 0.0
      %v1194 = vmax.f32 %v1149, 0.0
      %v1195 = vmax.f32 %v1163, 0.0
      %v1196 = vmax.f32 %v1177, 0.0
      %v1197 = vmax.f32 %v969, 0.0
      %v1198 = vmax.f32 %v983, 0.0
      %v1199 = vmax.f32 %v997, 0.0
      %v1200 = vmax.f32 %v1011, 0.0
      %v1201 = vmax.f32 %v1025, 0.0
      %v1202 = vmax.f32 %v1039, 0.0
      %v1203 = vmax.f32 %v1053, 0.0
      %v1204 = vmax.f32 %v1067, 0.0
      %v1205 = vmax.f32 %v1081, 0.0
      %v1206 = vmax.f32 %v1095, 0.0
      %v1207 = vmax.f32 %v1109, 0.0
      %v1208 = vmax.f32 %v1123, 0.0
      %v1209 = vmax.f32 %v1137, 0.0
      %v1210 = vmax.f32 %v1151, 0.0
      %v1211 = vmax.f32 %v1165, 0.0
      %v1212 = vmax.f32 %v1179, 0.0
      %v1213 = vpack.c.bf16 %v1197, %v1181
      %v1214 = vpack.c.bf16 %v1198, %v1182
      %v1215 = vpack.c.bf16 %v1199, %v1183
      %v1216 = vpack.c.bf16 %v1200, %v1184
      %v1217 = vpack.c.bf16 %v1201, %v1185
      %v1218 = vpack.c.bf16 %v1202, %v1186
      %v1219 = vpack.c.bf16 %v1203, %v1187
      %v1220 = vpack.c.bf16 %v1204, %v1188
      %v1221 = vpack.c.bf16 %v1205, %v1189
      %v1222 = vpack.c.bf16 %v1206, %v1190
      %v1223 = vpack.c.bf16 %v1207, %v1191
      %v1224 = vpack.c.bf16 %v1208, %v1192
      %v1225 = vpack.c.bf16 %v1209, %v1193
      %v1226 = vpack.c.bf16 %v1210, %v1194
      %v1227 = vpack.c.bf16 %v1211, %v1195
      %v1228 = vpack.c.bf16 %v1212, %v1196
      %v1229 = vld [vmem:[%s403] sm:$0xf]
      %v1230 = vld [vmem:[%s403 + $0x4] sm:$0xf]
      %v1231 = vld [vmem:[%s403 + $0x8] sm:$0xf]
      %v1232 = vld [vmem:[%s403 + $0xc] sm:$0xf]
      %v1233 = vld [vmem:[%s403 + $0x10] sm:$0xf]
      %v1234 = vld [vmem:[%s403 + $0x14] sm:$0xf]
      %v1235 = vld [vmem:[%s403 + $0x18] sm:$0xf]
      %v1236 = vld [vmem:[%s403 + $0x1c] sm:$0xf]
      %v1237 = vld [vmem:[%s403 + $0x20] sm:$0xf]
      %v1238 = vld [vmem:[%s403 + $0x24] sm:$0xf]
      %v1239 = vld [vmem:[%s403 + $0x28] sm:$0xf]
      %v1240 = vld [vmem:[%s403 + $0x2c] sm:$0xf]
      %v1241 = vld [vmem:[%s403 + $0x30] sm:$0xf]
      %v1242 = vld [vmem:[%s403 + $0x34] sm:$0xf]
      %v1243 = vld [vmem:[%s403 + $0x38] sm:$0xf]
      %v1244 = vld [vmem:[%s403 + $0x3c] sm:$0xf]
      %v1245 = vld [vmem:[%s403 + $0x40] sm:$0xf]
      %v1246 = vld [vmem:[%s403 + $0x44] sm:$0xf]
      %v1247 = vld [vmem:[%s403 + $0x48] sm:$0xf]
      %v1248 = vld [vmem:[%s403 + $0x4c] sm:$0xf]
      %v1249 = vld [vmem:[%s403 + $0x50] sm:$0xf]
      %v1250 = vld [vmem:[%s403 + $0x54] sm:$0xf]
      %v1251 = vld [vmem:[%s403 + $0x58] sm:$0xf]
      %v1252 = vld [vmem:[%s403 + $0x5c] sm:$0xf]
      %v1253 = vld [vmem:[%s403 + $0x60] sm:$0xf]
      %v1254 = vld [vmem:[%s403 + $0x64] sm:$0xf]
      %v1255 = vld [vmem:[%s403 + $0x68] sm:$0xf]
      %v1256 = vld [vmem:[%s403 + $0x6c] sm:$0xf]
      %v1257 = vld [vmem:[%s403 + $0x70] sm:$0xf]
      %v1258 = vld [vmem:[%s403 + $0x74] sm:$0xf]
      %v1259 = vld [vmem:[%s403 + $0x78] sm:$0xf]
      %v1260 = vld [vmem:[%s403 + $0x7c] sm:$0xf]
      %v1261 = vld [vmem:[%s403 + $0x80] sm:$0xf]
      %v1262 = vld [vmem:[%s403 + $0x84] sm:$0xf]
      %v1263 = vld [vmem:[%s403 + $0x88] sm:$0xf]
      %v1264 = vld [vmem:[%s403 + $0x8c] sm:$0xf]
      %v1265 = vld [vmem:[%s403 + $0x90] sm:$0xf]
      %v1266 = vld [vmem:[%s403 + $0x94] sm:$0xf]
      %v1267 = vld [vmem:[%s403 + $0x98] sm:$0xf]
      %v1268 = vld [vmem:[%s403 + $0x9c] sm:$0xf]
      %v1269 = vld [vmem:[%s403 + $0xa0] sm:$0xf]
      %v1270 = vld [vmem:[%s403 + $0xa4] sm:$0xf]
      %v1271 = vld [vmem:[%s403 + $0xa8] sm:$0xf]
      %v1272 = vld [vmem:[%s403 + $0xac] sm:$0xf]
      %v1273 = vld [vmem:[%s403 + $0xb0] sm:$0xf]
      %v1274 = vld [vmem:[%s403 + $0xb4] sm:$0xf]
      %v1275 = vld [vmem:[%s403 + $0xb8] sm:$0xf]
      %v1276 = vld [vmem:[%s403 + $0xbc] sm:$0xf]
      %v1277 = vld [vmem:[%s403 + $0xc0] sm:$0xf]
      %v1278 = vld [vmem:[%s403 + $0xc4] sm:$0xf]
      %v1279 = vld [vmem:[%s403 + $0xc8] sm:$0xf]
      %v1280 = vld [vmem:[%s403 + $0xcc] sm:$0xf]
      %v1281 = vld [vmem:[%s403 + $0xd0] sm:$0xf]
      %v1282 = vld [vmem:[%s403 + $0xd4] sm:$0xf]
      %v1283 = vld [vmem:[%s403 + $0xd8] sm:$0xf]
      %v1284 = vld [vmem:[%s403 + $0xdc] sm:$0xf]
      %v1285 = vld [vmem:[%s403 + $0xe0] sm:$0xf]
      %v1286 = vld [vmem:[%s403 + $0xe4] sm:$0xf]
      %v1287 = vld [vmem:[%s403 + $0xe8] sm:$0xf]
      %v1288 = vld [vmem:[%s403 + $0xec] sm:$0xf]
      %v1289 = vld [vmem:[%s403 + $0xf0] sm:$0xf]
      %v1290 = vld [vmem:[%s403 + $0xf4] sm:$0xf]
      %v1291 = vld [vmem:[%s403 + $0xf8] sm:$0xf]
      %v1292 = vld [vmem:[%s403 + $0xfc] sm:$0xf]
      %v1293 = vld [vmem:[%s403 + $0x100] sm:$0xf]
      %v1294 = vld [vmem:[%s403 + $0x104] sm:$0xf]
      %v1295 = vld [vmem:[%s403 + $0x108] sm:$0xf]
      %v1296 = vld [vmem:[%s403 + $0x10c] sm:$0xf]
      %v1297 = vld [vmem:[%s403 + $0x110] sm:$0xf]
      %v1298 = vld [vmem:[%s403 + $0x114] sm:$0xf]
      %v1299 = vld [vmem:[%s403 + $0x118] sm:$0xf]
      %v1300 = vld [vmem:[%s403 + $0x11c] sm:$0xf]
      %v1301 = vld [vmem:[%s403 + $0x120] sm:$0xf]
      %v1302 = vld [vmem:[%s403 + $0x124] sm:$0xf]
      %v1303 = vld [vmem:[%s403 + $0x128] sm:$0xf]
      %v1304 = vld [vmem:[%s403 + $0x12c] sm:$0xf]
      %v1305 = vld [vmem:[%s403 + $0x130] sm:$0xf]
      %v1306 = vld [vmem:[%s403 + $0x134] sm:$0xf]
      %v1307 = vld [vmem:[%s403 + $0x138] sm:$0xf]
      %v1308 = vld [vmem:[%s403 + $0x13c] sm:$0xf]
      %v1309 = vld [vmem:[%s403 + $0x140] sm:$0xf]
      %v1310 = vld [vmem:[%s403 + $0x144] sm:$0xf]
      %v1311 = vld [vmem:[%s403 + $0x148] sm:$0xf]
      %v1312 = vld [vmem:[%s403 + $0x14c] sm:$0xf]
      %v1313 = vld [vmem:[%s403 + $0x150] sm:$0xf]
      %v1314 = vld [vmem:[%s403 + $0x154] sm:$0xf]
      %v1315 = vld [vmem:[%s403 + $0x158] sm:$0xf]
      %v1316 = vld [vmem:[%s403 + $0x15c] sm:$0xf]
      %v1317 = vld [vmem:[%s403 + $0x160] sm:$0xf]
      %v1318 = vld [vmem:[%s403 + $0x164] sm:$0xf]
      %v1319 = vld [vmem:[%s403 + $0x168] sm:$0xf]
      %v1320 = vld [vmem:[%s403 + $0x16c] sm:$0xf]
      %v1321 = vld [vmem:[%s403 + $0x170] sm:$0xf]
      %v1322 = vld [vmem:[%s403 + $0x174] sm:$0xf]
      %v1323 = vld [vmem:[%s403 + $0x178] sm:$0xf]
      %v1324 = vld [vmem:[%s403 + $0x17c] sm:$0xf]
      %v1325 = vld [vmem:[%s403 + $0x180] sm:$0xf]
      %v1326 = vld [vmem:[%s403 + $0x184] sm:$0xf]
      %v1327 = vld [vmem:[%s403 + $0x188] sm:$0xf]
      %v1328 = vld [vmem:[%s403 + $0x18c] sm:$0xf]
      %v1329 = vld [vmem:[%s403 + $0x190] sm:$0xf]
      %v1330 = vld [vmem:[%s403 + $0x194] sm:$0xf]
      %v1331 = vld [vmem:[%s403 + $0x198] sm:$0xf]
      %v1332 = vld [vmem:[%s403 + $0x19c] sm:$0xf]
      %v1333 = vld [vmem:[%s403 + $0x1a0] sm:$0xf]
      %v1334 = vld [vmem:[%s403 + $0x1a4] sm:$0xf]
      %v1335 = vld [vmem:[%s403 + $0x1a8] sm:$0xf]
      %v1336 = vld [vmem:[%s403 + $0x1ac] sm:$0xf]
      %v1337 = vld [vmem:[%s403 + $0x1b0] sm:$0xf]
      %v1338 = vld [vmem:[%s403 + $0x1b4] sm:$0xf]
      %v1339 = vld [vmem:[%s403 + $0x1b8] sm:$0xf]
      %v1340 = vld [vmem:[%s403 + $0x1bc] sm:$0xf]
      %v1341 = vld [vmem:[%s403 + $0x1c0] sm:$0xf]
      %v1342 = vld [vmem:[%s403 + $0x1c4] sm:$0xf]
      %v1343 = vld [vmem:[%s403 + $0x1c8] sm:$0xf]
      %v1344 = vld [vmem:[%s403 + $0x1cc] sm:$0xf]
      %v1345 = vld [vmem:[%s403 + $0x1d0] sm:$0xf]
      %v1346 = vld [vmem:[%s403 + $0x1d4] sm:$0xf]
      %v1347 = vld [vmem:[%s403 + $0x1d8] sm:$0xf]
      %v1348 = vld [vmem:[%s403 + $0x1dc] sm:$0xf]
      %v1349 = vld [vmem:[%s403 + $0x1e0] sm:$0xf]
      %v1350 = vld [vmem:[%s403 + $0x1e4] sm:$0xf]
      %v1351 = vld [vmem:[%s403 + $0x1e8] sm:$0xf]
      %v1352 = vld [vmem:[%s403 + $0x1ec] sm:$0xf]
      %v1353 = vld [vmem:[%s403 + $0x1f0] sm:$0xf]
      %v1354 = vld [vmem:[%s403 + $0x1f4] sm:$0xf]
      %v1355 = vld [vmem:[%s403 + $0x1f8] sm:$0xf]
      %v1356 = vld [vmem:[%s403 + $0x1fc] sm:$0xf]
      %v1357 = vld [vmem:[%s403 + $0x200] sm:$0xf]
      %v1358 = vld [vmem:[%s403 + $0x204] sm:$0xf]
      %v1359 = vld [vmem:[%s403 + $0x208] sm:$0xf]
      %v1360 = vld [vmem:[%s403 + $0x20c] sm:$0xf]
      %v1361 = vld [vmem:[%s403 + $0x210] sm:$0xf]
      %v1362 = vld [vmem:[%s403 + $0x214] sm:$0xf]
      %v1363 = vld [vmem:[%s403 + $0x218] sm:$0xf]
      %v1364 = vld [vmem:[%s403 + $0x21c] sm:$0xf]
      %v1365 = vld [vmem:[%s403 + $0x220] sm:$0xf]
      %v1366 = vld [vmem:[%s403 + $0x224] sm:$0xf]
      %v1367 = vld [vmem:[%s403 + $0x228] sm:$0xf]
      %v1368 = vld [vmem:[%s403 + $0x22c] sm:$0xf]
      %v1369 = vld [vmem:[%s403 + $0x230] sm:$0xf]
      %v1370 = vld [vmem:[%s403 + $0x234] sm:$0xf]
      %v1371 = vld [vmem:[%s403 + $0x238] sm:$0xf]
      %v1372 = vld [vmem:[%s403 + $0x23c] sm:$0xf]
      %v1373 = vld [vmem:[%s403 + $0x240] sm:$0xf]
      %v1374 = vld [vmem:[%s403 + $0x244] sm:$0xf]
      %v1375 = vld [vmem:[%s403 + $0x248] sm:$0xf]
      %v1376 = vld [vmem:[%s403 + $0x24c] sm:$0xf]
      %v1377 = vld [vmem:[%s403 + $0x250] sm:$0xf]
      %v1378 = vld [vmem:[%s403 + $0x254] sm:$0xf]
      %v1379 = vld [vmem:[%s403 + $0x258] sm:$0xf]
      %v1380 = vld [vmem:[%s403 + $0x25c] sm:$0xf]
      %v1381 = vld [vmem:[%s403 + $0x260] sm:$0xf]
      %v1382 = vld [vmem:[%s403 + $0x264] sm:$0xf]
      %v1383 = vld [vmem:[%s403 + $0x268] sm:$0xf]
      %v1384 = vld [vmem:[%s403 + $0x26c] sm:$0xf]
      %v1385 = vld [vmem:[%s403 + $0x270] sm:$0xf]
      %v1386 = vld [vmem:[%s403 + $0x274] sm:$0xf]
      %v1387 = vld [vmem:[%s403 + $0x278] sm:$0xf]
      %v1388 = vld [vmem:[%s403 + $0x27c] sm:$0xf]
      %v1389 = vld [vmem:[%s403 + $0x280] sm:$0xf]
      %v1390 = vld [vmem:[%s403 + $0x284] sm:$0xf]
      %v1391 = vld [vmem:[%s403 + $0x288] sm:$0xf]
      %v1392 = vld [vmem:[%s403 + $0x28c] sm:$0xf]
      %v1393 = vld [vmem:[%s403 + $0x290] sm:$0xf]
      %v1394 = vld [vmem:[%s403 + $0x294] sm:$0xf]
      %v1395 = vld [vmem:[%s403 + $0x298] sm:$0xf]
      %v1396 = vld [vmem:[%s403 + $0x29c] sm:$0xf]
      %v1397 = vld [vmem:[%s403 + $0x2a0] sm:$0xf]
      %v1398 = vld [vmem:[%s403 + $0x2a4] sm:$0xf]
      %v1399 = vld [vmem:[%s403 + $0x2a8] sm:$0xf]
      %v1400 = vld [vmem:[%s403 + $0x2ac] sm:$0xf]
      %v1401 = vld [vmem:[%s403 + $0x2b0] sm:$0xf]
      %v1402 = vld [vmem:[%s403 + $0x2b4] sm:$0xf]
      %v1403 = vld [vmem:[%s403 + $0x2b8] sm:$0xf]
      %v1404 = vld [vmem:[%s403 + $0x2bc] sm:$0xf]
      %v1405 = vld [vmem:[%s403 + $0x2c0] sm:$0xf]
      %v1406 = vld [vmem:[%s403 + $0x2c4] sm:$0xf]
      %v1407 = vld [vmem:[%s403 + $0x2c8] sm:$0xf]
      %v1408 = vld [vmem:[%s403 + $0x2cc] sm:$0xf]
      %v1409 = vld [vmem:[%s403 + $0x2d0] sm:$0xf]
      %v1410 = vld [vmem:[%s403 + $0x2d4] sm:$0xf]
      %v1411 = vld [vmem:[%s403 + $0x2d8] sm:$0xf]
      %v1412 = vld [vmem:[%s403 + $0x2dc] sm:$0xf]
      %v1413 = vld [vmem:[%s403 + $0x2e0] sm:$0xf]
      %v1414 = vld [vmem:[%s403 + $0x2e4] sm:$0xf]
      %v1415 = vld [vmem:[%s403 + $0x2e8] sm:$0xf]
      %v1416 = vld [vmem:[%s403 + $0x2ec] sm:$0xf]
      %v1417 = vld [vmem:[%s403 + $0x2f0] sm:$0xf]
      %v1418 = vld [vmem:[%s403 + $0x2f4] sm:$0xf]
      %v1419 = vld [vmem:[%s403 + $0x2f8] sm:$0xf]
      %v1420 = vld [vmem:[%s403 + $0x2fc] sm:$0xf]
      %v1421 = vld [vmem:[%s403 + $0x300] sm:$0xf]
      %v1422 = vld [vmem:[%s403 + $0x304] sm:$0xf]
      %v1423 = vld [vmem:[%s403 + $0x308] sm:$0xf]
      %v1424 = vld [vmem:[%s403 + $0x30c] sm:$0xf]
      %v1425 = vld [vmem:[%s403 + $0x310] sm:$0xf]
      %v1426 = vld [vmem:[%s403 + $0x314] sm:$0xf]
      %v1427 = vld [vmem:[%s403 + $0x318] sm:$0xf]
      %v1428 = vld [vmem:[%s403 + $0x31c] sm:$0xf]
      %v1429 = vld [vmem:[%s403 + $0x320] sm:$0xf]
      %v1430 = vld [vmem:[%s403 + $0x324] sm:$0xf]
      %v1431 = vld [vmem:[%s403 + $0x328] sm:$0xf]
      %v1432 = vld [vmem:[%s403 + $0x32c] sm:$0xf]
      %v1433 = vld [vmem:[%s403 + $0x330] sm:$0xf]
      %v1434 = vld [vmem:[%s403 + $0x334] sm:$0xf]
      %v1435 = vld [vmem:[%s403 + $0x338] sm:$0xf]
      %v1436 = vld [vmem:[%s403 + $0x33c] sm:$0xf]
      %v1437 = vld [vmem:[%s403 + $0x340] sm:$0xf]
      %v1438 = vld [vmem:[%s403 + $0x344] sm:$0xf]
      %v1439 = vld [vmem:[%s403 + $0x348] sm:$0xf]
      %v1440 = vld [vmem:[%s403 + $0x34c] sm:$0xf]
      %v1441 = vld [vmem:[%s403 + $0x350] sm:$0xf]
      %v1442 = vld [vmem:[%s403 + $0x354] sm:$0xf]
      %v1443 = vld [vmem:[%s403 + $0x358] sm:$0xf]
      %v1444 = vld [vmem:[%s403 + $0x35c] sm:$0xf]
      %v1445 = vld [vmem:[%s403 + $0x360] sm:$0xf]
      %v1446 = vld [vmem:[%s403 + $0x364] sm:$0xf]
      %v1447 = vld [vmem:[%s403 + $0x368] sm:$0xf]
      %v1448 = vld [vmem:[%s403 + $0x36c] sm:$0xf]
      %v1449 = vld [vmem:[%s403 + $0x370] sm:$0xf]
      %v1450 = vld [vmem:[%s403 + $0x374] sm:$0xf]
      %v1451 = vld [vmem:[%s403 + $0x378] sm:$0xf]
      %v1452 = vld [vmem:[%s403 + $0x37c] sm:$0xf]
      %v1453 = vld [vmem:[%s403 + $0x380] sm:$0xf]
      %v1454 = vld [vmem:[%s403 + $0x384] sm:$0xf]
      %v1455 = vld [vmem:[%s403 + $0x388] sm:$0xf]
      %v1456 = vld [vmem:[%s403 + $0x38c] sm:$0xf]
      %v1457 = vld [vmem:[%s403 + $0x390] sm:$0xf]
      %v1458 = vld [vmem:[%s403 + $0x394] sm:$0xf]
      %v1459 = vld [vmem:[%s403 + $0x398] sm:$0xf]
      %v1460 = vld [vmem:[%s403 + $0x39c] sm:$0xf]
      %v1461 = vld [vmem:[%s403 + $0x3a0] sm:$0xf]
      %v1462 = vld [vmem:[%s403 + $0x3a4] sm:$0xf]
      %v1463 = vld [vmem:[%s403 + $0x3a8] sm:$0xf]
      %v1464 = vld [vmem:[%s403 + $0x3ac] sm:$0xf]
      %v1465 = vld [vmem:[%s403 + $0x3b0] sm:$0xf]
      %v1466 = vld [vmem:[%s403 + $0x3b4] sm:$0xf]
      %v1467 = vld [vmem:[%s403 + $0x3b8] sm:$0xf]
      %v1468 = vld [vmem:[%s403 + $0x3bc] sm:$0xf]
      %v1469 = vld [vmem:[%s403 + $0x3c0] sm:$0xf]
      %v1470 = vld [vmem:[%s403 + $0x3c4] sm:$0xf]
      %v1471 = vld [vmem:[%s403 + $0x3c8] sm:$0xf]
      %v1472 = vld [vmem:[%s403 + $0x3cc] sm:$0xf]
      %v1473 = vld [vmem:[%s403 + $0x3d0] sm:$0xf]
      %v1474 = vld [vmem:[%s403 + $0x3d4] sm:$0xf]
      %v1475 = vld [vmem:[%s403 + $0x3d8] sm:$0xf]
      %v1476 = vld [vmem:[%s403 + $0x3dc] sm:$0xf]
      %v1477 = vld [vmem:[%s403 + $0x3e0] sm:$0xf]
      %v1478 = vld [vmem:[%s403 + $0x3e4] sm:$0xf]
      %v1479 = vld [vmem:[%s403 + $0x3e8] sm:$0xf]
      %v1480 = vld [vmem:[%s403 + $0x3ec] sm:$0xf]
      %v1481 = vld [vmem:[%s403 + $0x3f0] sm:$0xf]
      %v1482 = vld [vmem:[%s403 + $0x3f4] sm:$0xf]
      %v1483 = vld [vmem:[%s403 + $0x3f8] sm:$0xf]
      %v1484 = vld [vmem:[%s403 + $0x3fc] sm:$0xf]
      %v1485 = vperm.slane %v482, 6
      %v1742 = vunpack.c.l.b16 %v1229
      %v1743 = vunpack.c.l.b16 %v1230
      %v1744 = vunpack.c.l.b16 %v1231
      %v1745 = vunpack.c.l.b16 %v1232
      %v1746 = vunpack.c.l.b16 %v1233
      %v1747 = vunpack.c.l.b16 %v1234
      %v1748 = vunpack.c.l.b16 %v1235
      %v1749 = vunpack.c.l.b16 %v1236
      %v1750 = vunpack.c.l.b16 %v1237
      %v1751 = vunpack.c.l.b16 %v1238
      %v1752 = vunpack.c.l.b16 %v1239
      %v1753 = vunpack.c.l.b16 %v1240
      %v1754 = vunpack.c.l.b16 %v1241
      %v1755 = vunpack.c.l.b16 %v1242
      %v1756 = vunpack.c.l.b16 %v1243
      %v1757 = vunpack.c.l.b16 %v1244
      %v1758 = vunpack.c.l.b16 %v1245
      %v1759 = vunpack.c.l.b16 %v1246
      %v1760 = vunpack.c.l.b16 %v1247
      %v1761 = vunpack.c.l.b16 %v1248
      %v1762 = vunpack.c.l.b16 %v1249
      %v1763 = vunpack.c.l.b16 %v1250
      %v1764 = vunpack.c.l.b16 %v1251
      %v1765 = vunpack.c.l.b16 %v1252
      %v1766 = vunpack.c.l.b16 %v1253
      %v1767 = vunpack.c.l.b16 %v1254
      %v1768 = vunpack.c.l.b16 %v1255
      %v1769 = vunpack.c.l.b16 %v1256
      %v1770 = vunpack.c.l.b16 %v1257
      %v1771 = vunpack.c.l.b16 %v1258
      %v1772 = vunpack.c.l.b16 %v1259
      %v1773 = vunpack.c.l.b16 %v1260
      %v1774 = vunpack.c.l.b16 %v1261
      %v1775 = vunpack.c.l.b16 %v1262
      %v1776 = vunpack.c.l.b16 %v1263
      %v1777 = vunpack.c.l.b16 %v1264
      %v1778 = vunpack.c.l.b16 %v1265
      %v1779 = vunpack.c.l.b16 %v1266
      %v1780 = vunpack.c.l.b16 %v1267
      %v1781 = vunpack.c.l.b16 %v1268
      %v1782 = vunpack.c.l.b16 %v1269
      %v1783 = vunpack.c.l.b16 %v1270
      %v1784 = vunpack.c.l.b16 %v1271
      %v1785 = vunpack.c.l.b16 %v1272
      %v1786 = vunpack.c.l.b16 %v1273
      %v1787 = vunpack.c.l.b16 %v1274
      %v1788 = vunpack.c.l.b16 %v1275
      %v1789 = vunpack.c.l.b16 %v1276
      %v1790 = vunpack.c.l.b16 %v1277
      %v1791 = vunpack.c.l.b16 %v1278
      %v1792 = vunpack.c.l.b16 %v1279
      %v1793 = vunpack.c.l.b16 %v1280
      %v1794 = vunpack.c.l.b16 %v1281
      %v1795 = vunpack.c.l.b16 %v1282
      %v1796 = vunpack.c.l.b16 %v1283
      %v1797 = vunpack.c.l.b16 %v1284
      %v1798 = vunpack.c.l.b16 %v1285
      %v1799 = vunpack.c.l.b16 %v1286
      %v1800 = vunpack.c.l.b16 %v1287
      %v1801 = vunpack.c.l.b16 %v1288
      %v1802 = vunpack.c.l.b16 %v1289
      %v1803 = vunpack.c.l.b16 %v1290
      %v1804 = vunpack.c.l.b16 %v1291
      %v1805 = vunpack.c.l.b16 %v1292
      %v1806 = vunpack.c.l.b16 %v1293
      %v1807 = vunpack.c.l.b16 %v1294
      %v1808 = vunpack.c.l.b16 %v1295
      %v1809 = vunpack.c.l.b16 %v1296
      %v1810 = vunpack.c.l.b16 %v1297
      %v1811 = vunpack.c.l.b16 %v1298
      %v1812 = vunpack.c.l.b16 %v1299
      %v1813 = vunpack.c.l.b16 %v1300
      %v1814 = vunpack.c.l.b16 %v1301
      %v1815 = vunpack.c.l.b16 %v1302
      %v1816 = vunpack.c.l.b16 %v1303
      %v1817 = vunpack.c.l.b16 %v1304
      %v1818 = vunpack.c.l.b16 %v1305
      %v1819 = vunpack.c.l.b16 %v1306
      %v1820 = vunpack.c.l.b16 %v1307
      %v1821 = vunpack.c.l.b16 %v1308
      %v1822 = vunpack.c.l.b16 %v1309
      %v1823 = vunpack.c.l.b16 %v1310
      %v1824 = vunpack.c.l.b16 %v1311
      %v1825 = vunpack.c.l.b16 %v1312
      %v1826 = vunpack.c.l.b16 %v1313
      %v1827 = vunpack.c.l.b16 %v1314
      %v1828 = vunpack.c.l.b16 %v1315
      %v1829 = vunpack.c.l.b16 %v1316
      %v1830 = vunpack.c.l.b16 %v1317
      %v1831 = vunpack.c.l.b16 %v1318
      %v1832 = vunpack.c.l.b16 %v1319
      %v1833 = vunpack.c.l.b16 %v1320
      %v1834 = vunpack.c.l.b16 %v1321
      %v1835 = vunpack.c.l.b16 %v1322
      %v1836 = vunpack.c.l.b16 %v1323
      %v1837 = vunpack.c.l.b16 %v1324
      %v1838 = vunpack.c.l.b16 %v1325
      %v1839 = vunpack.c.l.b16 %v1326
      %v1840 = vunpack.c.l.b16 %v1327
      %v1841 = vunpack.c.l.b16 %v1328
      %v1842 = vunpack.c.l.b16 %v1329
      %v1843 = vunpack.c.l.b16 %v1330
      %v1844 = vunpack.c.l.b16 %v1331
      %v1845 = vunpack.c.l.b16 %v1332
      %v1846 = vunpack.c.l.b16 %v1333
      %v1847 = vunpack.c.l.b16 %v1334
      %v1848 = vunpack.c.l.b16 %v1335
      %v1849 = vunpack.c.l.b16 %v1336
      %v1850 = vunpack.c.l.b16 %v1337
      %v1851 = vunpack.c.l.b16 %v1338
      %v1852 = vunpack.c.l.b16 %v1339
      %v1853 = vunpack.c.l.b16 %v1340
      %v1854 = vunpack.c.l.b16 %v1341
      %v1855 = vunpack.c.l.b16 %v1342
      %v1856 = vunpack.c.l.b16 %v1343
      %v1857 = vunpack.c.l.b16 %v1344
      %v1858 = vunpack.c.l.b16 %v1345
      %v1859 = vunpack.c.l.b16 %v1346
      %v1860 = vunpack.c.l.b16 %v1347
      %v1861 = vunpack.c.l.b16 %v1348
      %v1862 = vunpack.c.l.b16 %v1349
      %v1863 = vunpack.c.l.b16 %v1350
      %v1864 = vunpack.c.l.b16 %v1351
      %v1865 = vunpack.c.l.b16 %v1352
      %v1866 = vunpack.c.l.b16 %v1353
      %v1867 = vunpack.c.l.b16 %v1354
      %v1868 = vunpack.c.l.b16 %v1355
      %v1869 = vunpack.c.l.b16 %v1356
      %v1870 = vunpack.c.l.b16 %v1357
      %v1871 = vunpack.c.l.b16 %v1358
      %v1872 = vunpack.c.l.b16 %v1359
      %v1873 = vunpack.c.l.b16 %v1360
      %v1874 = vunpack.c.l.b16 %v1361
      %v1875 = vunpack.c.l.b16 %v1362
      %v1876 = vunpack.c.l.b16 %v1363
      %v1877 = vunpack.c.l.b16 %v1364
      %v1878 = vunpack.c.l.b16 %v1365
      %v1879 = vunpack.c.l.b16 %v1366
      %v1880 = vunpack.c.l.b16 %v1367
      %v1881 = vunpack.c.l.b16 %v1368
      %v1882 = vunpack.c.l.b16 %v1369
      %v1883 = vunpack.c.l.b16 %v1370
      %v1884 = vunpack.c.l.b16 %v1371
      %v1885 = vunpack.c.l.b16 %v1372
      %v1886 = vunpack.c.l.b16 %v1373
      %v1887 = vunpack.c.l.b16 %v1374
      %v1888 = vunpack.c.l.b16 %v1375
      %v1889 = vunpack.c.l.b16 %v1376
      %v1890 = vunpack.c.l.b16 %v1377
      %v1891 = vunpack.c.l.b16 %v1378
      %v1892 = vunpack.c.l.b16 %v1379
      %v1893 = vunpack.c.l.b16 %v1380
      %v1894 = vunpack.c.l.b16 %v1381
      %v1895 = vunpack.c.l.b16 %v1382
      %v1896 = vunpack.c.l.b16 %v1383
      %v1897 = vunpack.c.l.b16 %v1384
      %v1898 = vunpack.c.l.b16 %v1385
      %v1899 = vunpack.c.l.b16 %v1386
      %v1900 = vunpack.c.l.b16 %v1387
      %v1901 = vunpack.c.l.b16 %v1388
      %v1902 = vunpack.c.l.b16 %v1389
      %v1903 = vunpack.c.l.b16 %v1390
      %v1904 = vunpack.c.l.b16 %v1391
      %v1905 = vunpack.c.l.b16 %v1392
      %v1906 = vunpack.c.l.b16 %v1393
      %v1907 = vunpack.c.l.b16 %v1394
      %v1908 = vunpack.c.l.b16 %v1395
      %v1909 = vunpack.c.l.b16 %v1396
      %v1910 = vunpack.c.l.b16 %v1397
      %v1911 = vunpack.c.l.b16 %v1398
      %v1912 = vunpack.c.l.b16 %v1399
      %v1913 = vunpack.c.l.b16 %v1400
      %v1914 = vunpack.c.l.b16 %v1401
      %v1915 = vunpack.c.l.b16 %v1402
      %v1916 = vunpack.c.l.b16 %v1403
      %v1917 = vunpack.c.l.b16 %v1404
      %v1918 = vunpack.c.l.b16 %v1405
      %v1919 = vunpack.c.l.b16 %v1406
      %v1920 = vunpack.c.l.b16 %v1407
      %v1921 = vunpack.c.l.b16 %v1408
      %v1922 = vunpack.c.l.b16 %v1409
      %v1923 = vunpack.c.l.b16 %v1410
      %v1924 = vunpack.c.l.b16 %v1411
      %v1925 = vunpack.c.l.b16 %v1412
      %v1926 = vunpack.c.l.b16 %v1413
      %v1927 = vunpack.c.l.b16 %v1414
      %v1928 = vunpack.c.l.b16 %v1415
      %v1929 = vunpack.c.l.b16 %v1416
      %v1930 = vunpack.c.l.b16 %v1417
      %v1931 = vunpack.c.l.b16 %v1418
      %v1932 = vunpack.c.l.b16 %v1419
      %v1933 = vunpack.c.l.b16 %v1420
      %v1934 = vunpack.c.l.b16 %v1421
      %v1935 = vunpack.c.l.b16 %v1422
      %v1936 = vunpack.c.l.b16 %v1423
      %v1937 = vunpack.c.l.b16 %v1424
      %v1938 = vunpack.c.l.b16 %v1425
      %v1939 = vunpack.c.l.b16 %v1426
      %v1940 = vunpack.c.l.b16 %v1427
      %v1941 = vunpack.c.l.b16 %v1428
      %v1942 = vunpack.c.l.b16 %v1429
      %v1943 = vunpack.c.l.b16 %v1430
      %v1944 = vunpack.c.l.b16 %v1431
      %v1945 = vunpack.c.l.b16 %v1432
      %v1946 = vunpack.c.l.b16 %v1433
      %v1947 = vunpack.c.l.b16 %v1434
      %v1948 = vunpack.c.l.b16 %v1435
      %v1949 = vunpack.c.l.b16 %v1436
      %v1950 = vunpack.c.l.b16 %v1437
      %v1951 = vunpack.c.l.b16 %v1438
      %v1952 = vunpack.c.l.b16 %v1439
      %v1953 = vunpack.c.l.b16 %v1440
      %v1954 = vunpack.c.l.b16 %v1441
      %v1955 = vunpack.c.l.b16 %v1442
      %v1956 = vunpack.c.l.b16 %v1443
      %v1957 = vunpack.c.l.b16 %v1444
      %v1958 = vunpack.c.l.b16 %v1445
      %v1959 = vunpack.c.l.b16 %v1446
      %v1960 = vunpack.c.l.b16 %v1447
      %v1961 = vunpack.c.l.b16 %v1448
      %v1962 = vunpack.c.l.b16 %v1449
      %v1963 = vunpack.c.l.b16 %v1450
      %v1964 = vunpack.c.l.b16 %v1451
      %v1965 = vunpack.c.l.b16 %v1452
      %v1966 = vunpack.c.l.b16 %v1453
      %v1967 = vunpack.c.l.b16 %v1454
      %v1968 = vunpack.c.l.b16 %v1455
      %v1969 = vunpack.c.l.b16 %v1456
      %v1970 = vunpack.c.l.b16 %v1457
      %v1971 = vunpack.c.l.b16 %v1458
      %v1972 = vunpack.c.l.b16 %v1459
      %v1973 = vunpack.c.l.b16 %v1460
      %v1974 = vunpack.c.l.b16 %v1461
      %v1975 = vunpack.c.l.b16 %v1462
      %v1976 = vunpack.c.l.b16 %v1463
      %v1977 = vunpack.c.l.b16 %v1464
      %v1978 = vunpack.c.l.b16 %v1465
      %v1979 = vunpack.c.l.b16 %v1466
      %v1980 = vunpack.c.l.b16 %v1467
      %v1981 = vunpack.c.l.b16 %v1468
      %v1982 = vunpack.c.l.b16 %v1469
      %v1983 = vunpack.c.l.b16 %v1470
      %v1984 = vunpack.c.l.b16 %v1471
      %v1985 = vunpack.c.l.b16 %v1472
      %v1986 = vunpack.c.l.b16 %v1473
      %v1987 = vunpack.c.l.b16 %v1474
      %v1988 = vunpack.c.l.b16 %v1475
      %v1989 = vunpack.c.l.b16 %v1476
      %v1990 = vunpack.c.l.b16 %v1477
      %v1991 = vunpack.c.l.b16 %v1478
      %v1992 = vunpack.c.l.b16 %v1479
      %v1993 = vunpack.c.l.b16 %v1480
      %v1994 = vunpack.c.l.b16 %v1481
      %v1995 = vunpack.c.l.b16 %v1482
      %v1996 = vunpack.c.l.b16 %v1483
      %v1997 = vunpack.c.l.b16 %v1484
      %v1998 = vpack.c.b16 %v1743, %v1742
      %v1999 = vpack.c.b16 %v1745, %v1744
      %v2000 = vpack.c.b16 %v1747, %v1746
      %v2001 = vpack.c.b16 %v1749, %v1748
      %v2002 = vpack.c.b16 %v1751, %v1750
      %v2003 = vpack.c.b16 %v1753, %v1752
      %v2004 = vpack.c.b16 %v1755, %v1754
      %v2005 = vpack.c.b16 %v1757, %v1756
      %v2006 = vpack.c.b16 %v1759, %v1758
      %v2007 = vpack.c.b16 %v1761, %v1760
      %v2008 = vpack.c.b16 %v1763, %v1762
      %v2009 = vpack.c.b16 %v1765, %v1764
      %v2010 = vpack.c.b16 %v1767, %v1766
      %v2011 = vpack.c.b16 %v1769, %v1768
      %v2012 = vpack.c.b16 %v1771, %v1770
      %v2013 = vpack.c.b16 %v1773, %v1772
      %v2014 = vpack.c.b16 %v1775, %v1774
      %v2015 = vpack.c.b16 %v1777, %v1776
      %v2016 = vpack.c.b16 %v1779, %v1778
      %v2017 = vpack.c.b16 %v1781, %v1780
      %v2018 = vpack.c.b16 %v1783, %v1782
      %v2019 = vpack.c.b16 %v1785, %v1784
      %v2020 = vpack.c.b16 %v1787, %v1786
      %v2021 = vpack.c.b16 %v1789, %v1788
      %v2022 = vpack.c.b16 %v1791, %v1790
      %v2023 = vpack.c.b16 %v1793, %v1792
      %v2024 = vpack.c.b16 %v1795, %v1794
      %v2025 = vpack.c.b16 %v1797, %v1796
      %v2026 = vpack.c.b16 %v1799, %v1798
      %v2027 = vpack.c.b16 %v1801, %v1800
      %v2028 = vpack.c.b16 %v1803, %v1802
      %v2029 = vpack.c.b16 %v1805, %v1804
      %v2030 = vpack.c.b16 %v1807, %v1806
      %v2031 = vpack.c.b16 %v1809, %v1808
      %v2032 = vpack.c.b16 %v1811, %v1810
      %v2033 = vpack.c.b16 %v1813, %v1812
      %v2034 = vpack.c.b16 %v1815, %v1814
      %v2035 = vpack.c.b16 %v1817, %v1816
      %v2036 = vpack.c.b16 %v1819, %v1818
      %v2037 = vpack.c.b16 %v1821, %v1820
      %v2038 = vpack.c.b16 %v1823, %v1822
      %v2039 = vpack.c.b16 %v1825, %v1824
      %v2040 = vpack.c.b16 %v1827, %v1826
      %v2041 = vpack.c.b16 %v1829, %v1828
      %v2042 = vpack.c.b16 %v1831, %v1830
      %v2043 = vpack.c.b16 %v1833, %v1832
      %v2044 = vpack.c.b16 %v1835, %v1834
      %v2045 = vpack.c.b16 %v1837, %v1836
      %v2046 = vpack.c.b16 %v1839, %v1838
      %v2047 = vpack.c.b16 %v1841, %v1840
      %v2048 = vpack.c.b16 %v1843, %v1842
      %v2049 = vpack.c.b16 %v1845, %v1844
      %v2050 = vpack.c.b16 %v1847, %v1846
      %v2051 = vpack.c.b16 %v1849, %v1848
      %v2052 = vpack.c.b16 %v1851, %v1850
      %v2053 = vpack.c.b16 %v1853, %v1852
      %v2054 = vpack.c.b16 %v1855, %v1854
      %v2055 = vpack.c.b16 %v1857, %v1856
      %v2056 = vpack.c.b16 %v1859, %v1858
      %v2057 = vpack.c.b16 %v1861, %v1860
      %v2058 = vpack.c.b16 %v1863, %v1862
      %v2059 = vpack.c.b16 %v1865, %v1864
      %v2060 = vpack.c.b16 %v1867, %v1866
      %v2061 = vpack.c.b16 %v1869, %v1868
      %v2062 = vpack.c.b16 %v1871, %v1870
      %v2063 = vpack.c.b16 %v1873, %v1872
      %v2064 = vpack.c.b16 %v1875, %v1874
      %v2065 = vpack.c.b16 %v1877, %v1876
      %v2066 = vpack.c.b16 %v1879, %v1878
      %v2067 = vpack.c.b16 %v1881, %v1880
      %v2068 = vpack.c.b16 %v1883, %v1882
      %v2069 = vpack.c.b16 %v1885, %v1884
      %v2070 = vpack.c.b16 %v1887, %v1886
      %v2071 = vpack.c.b16 %v1889, %v1888
      %v2072 = vpack.c.b16 %v1891, %v1890
      %v2073 = vpack.c.b16 %v1893, %v1892
      %v2074 = vpack.c.b16 %v1895, %v1894
      %v2075 = vpack.c.b16 %v1897, %v1896
      %v2076 = vpack.c.b16 %v1899, %v1898
      %v2077 = vpack.c.b16 %v1901, %v1900
      %v2078 = vpack.c.b16 %v1903, %v1902
      %v2079 = vpack.c.b16 %v1905, %v1904
      %v2080 = vpack.c.b16 %v1907, %v1906
      %v2081 = vpack.c.b16 %v1909, %v1908
      %v2082 = vpack.c.b16 %v1911, %v1910
      %v2083 = vpack.c.b16 %v1913, %v1912
      %v2084 = vpack.c.b16 %v1915, %v1914
      %v2085 = vpack.c.b16 %v1917, %v1916
      %v2086 = vpack.c.b16 %v1919, %v1918
      %v2087 = vpack.c.b16 %v1921, %v1920
      %v2088 = vpack.c.b16 %v1923, %v1922
      %v2089 = vpack.c.b16 %v1925, %v1924
      %v2090 = vpack.c.b16 %v1927, %v1926
      %v2091 = vpack.c.b16 %v1929, %v1928
      %v2092 = vpack.c.b16 %v1931, %v1930
      %v2093 = vpack.c.b16 %v1933, %v1932
      %v2094 = vpack.c.b16 %v1935, %v1934
      %v2095 = vpack.c.b16 %v1937, %v1936
      %v2096 = vpack.c.b16 %v1939, %v1938
      %v2097 = vpack.c.b16 %v1941, %v1940
      %v2098 = vpack.c.b16 %v1943, %v1942
      %v2099 = vpack.c.b16 %v1945, %v1944
      %v2100 = vpack.c.b16 %v1947, %v1946
      %v2101 = vpack.c.b16 %v1949, %v1948
      %v2102 = vpack.c.b16 %v1951, %v1950
      %v2103 = vpack.c.b16 %v1953, %v1952
      %v2104 = vpack.c.b16 %v1955, %v1954
      %v2105 = vpack.c.b16 %v1957, %v1956
      %v2106 = vpack.c.b16 %v1959, %v1958
      %v2107 = vpack.c.b16 %v1961, %v1960
      %v2108 = vpack.c.b16 %v1963, %v1962
      %v2109 = vpack.c.b16 %v1965, %v1964
      %v2110 = vpack.c.b16 %v1967, %v1966
      %v2111 = vpack.c.b16 %v1969, %v1968
      %v2112 = vpack.c.b16 %v1971, %v1970
      %v2113 = vpack.c.b16 %v1973, %v1972
      %v2114 = vpack.c.b16 %v1975, %v1974
      %v2115 = vpack.c.b16 %v1977, %v1976
      %v2116 = vpack.c.b16 %v1979, %v1978
      %v2117 = vpack.c.b16 %v1981, %v1980
      %v2118 = vpack.c.b16 %v1983, %v1982
      %v2119 = vpack.c.b16 %v1985, %v1984
      %v2120 = vpack.c.b16 %v1987, %v1986
      %v2121 = vpack.c.b16 %v1989, %v1988
      %v2122 = vpack.c.b16 %v1991, %v1990
      %v2123 = vpack.c.b16 %v1993, %v1992
      %v2124 = vpack.c.b16 %v1995, %v1994
      %v2125 = vpack.c.b16 %v1997, %v1996
      %2254 = vmatpush.bf16.msra.mxu0 %v2005
      %2255 = vmatpush.bf16.msra.mxu0 %v2004
      %2256 = vmatpush.bf16.msra.mxu0 %v2003
      %2257 = vmatpush.bf16.msra.mxu0 %v2002
      %2258 = vmatpush.bf16.msra.mxu0 %v2001
      %2259 = vmatpush.bf16.msra.mxu0 %v2000
      %2260 = vmatpush.bf16.msra.mxu0 %v1999
      %2261 = vmatpush.bf16.msra.mxu0 %v1998
      %2262 = vmatmul.bf16.gmra.mxu0 %v1213
      %v2263 = vpop.f32.mrf.mxu0
      %v2264 = vadd.f32 %v1485, %v2263
      %v2265 = vpop.f32.mrf.mxu0
      %v2266 = vadd.f32 %v1485, %v2265
      %2267 = vdwg.mxu0
      %2268 = vmatpush.bf16.msra.mxu0 %v2013
      %2269 = vmatpush.bf16.msra.mxu0 %v2012
      %2270 = vmatpush.bf16.msra.mxu0 %v2011
      %2271 = vmatpush.bf16.msra.mxu0 %v2010
      %2272 = vmatpush.bf16.msra.mxu0 %v2009
      %2273 = vmatpush.bf16.msra.mxu0 %v2008
      %2274 = vmatpush.bf16.msra.mxu0 %v2007
      %2275 = vmatpush.bf16.msra.mxu0 %v2006
      %2276 = vmatmul.bf16.gmra.mxu0 %v1214
      %v2277 = vpop.f32.mrf.mxu0
      %v2278 = vadd.f32 %v2264, %v2277
      %v2279 = vpop.f32.mrf.mxu0
      %v2280 = vadd.f32 %v2266, %v2279
      %2281 = vdwg.mxu0
      %2282 = vmatpush.bf16.msra.mxu0 %v2021
      %2283 = vmatpush.bf16.msra.mxu0 %v2020
      %2284 = vmatpush.bf16.msra.mxu0 %v2019
      %2285 = vmatpush.bf16.msra.mxu0 %v2018
      %2286 = vmatpush.bf16.msra.mxu0 %v2017
      %2287 = vmatpush.bf16.msra.mxu0 %v2016
      %2288 = vmatpush.bf16.msra.mxu0 %v2015
      %2289 = vmatpush.bf16.msra.mxu0 %v2014
      %2290 = vmatmul.bf16.gmra.mxu0 %v1215
      %v2291 = vpop.f32.mrf.mxu0
      %v2292 = vadd.f32 %v2278, %v2291
      %v2293 = vpop.f32.mrf.mxu0
      %v2294 = vadd.f32 %v2280, %v2293
      %2295 = vdwg.mxu0
      %2296 = vmatpush.bf16.msra.mxu0 %v2029
      %2297 = vmatpush.bf16.msra.mxu0 %v2028
      %2298 = vmatpush.bf16.msra.mxu0 %v2027
      %2299 = vmatpush.bf16.msra.mxu0 %v2026
      %2300 = vmatpush.bf16.msra.mxu0 %v2025
      %2301 = vmatpush.bf16.msra.mxu0 %v2024
      %2302 = vmatpush.bf16.msra.mxu0 %v2023
      %2303 = vmatpush.bf16.msra.mxu0 %v2022
      %2304 = vmatmul.bf16.gmra.mxu0 %v1216
      %v2305 = vpop.f32.mrf.mxu0
      %v2306 = vadd.f32 %v2292, %v2305
      %v2307 = vpop.f32.mrf.mxu0
      %v2308 = vadd.f32 %v2294, %v2307
      %2309 = vdwg.mxu0
      %2310 = vmatpush.bf16.msra.mxu0 %v2037
      %2311 = vmatpush.bf16.msra.mxu0 %v2036
      %2312 = vmatpush.bf16.msra.mxu0 %v2035
      %2313 = vmatpush.bf16.msra.mxu0 %v2034
      %2314 = vmatpush.bf16.msra.mxu0 %v2033
      %2315 = vmatpush.bf16.msra.mxu0 %v2032
      %2316 = vmatpush.bf16.msra.mxu0 %v2031
      %2317 = vmatpush.bf16.msra.mxu0 %v2030
      %2318 = vmatmul.bf16.gmra.mxu0 %v1217
      %v2319 = vpop.f32.mrf.mxu0
      %v2320 = vadd.f32 %v2306, %v2319
      %v2321 = vpop.f32.mrf.mxu0
      %v2322 = vadd.f32 %v2308, %v2321
      %2323 = vdwg.mxu0
      %2324 = vmatpush.bf16.msra.mxu0 %v2045
      %2325 = vmatpush.bf16.msra.mxu0 %v2044
      %2326 = vmatpush.bf16.msra.mxu0 %v2043
      %2327 = vmatpush.bf16.msra.mxu0 %v2042
      %2328 = vmatpush.bf16.msra.mxu0 %v2041
      %2329 = vmatpush.bf16.msra.mxu0 %v2040
      %2330 = vmatpush.bf16.msra.mxu0 %v2039
      %2331 = vmatpush.bf16.msra.mxu0 %v2038
      %2332 = vmatmul.bf16.gmra.mxu0 %v1218
      %v2333 = vpop.f32.mrf.mxu0
      %v2334 = vadd.f32 %v2320, %v2333
      %v2335 = vpop.f32.mrf.mxu0
      %v2336 = vadd.f32 %v2322, %v2335
      %2337 = vdwg.mxu0
      %2338 = vmatpush.bf16.msra.mxu0 %v2053
      %2339 = vmatpush.bf16.msra.mxu0 %v2052
      %2340 = vmatpush.bf16.msra.mxu0 %v2051
      %2341 = vmatpush.bf16.msra.mxu0 %v2050
      %2342 = vmatpush.bf16.msra.mxu0 %v2049
      %2343 = vmatpush.bf16.msra.mxu0 %v2048
      %2344 = vmatpush.bf16.msra.mxu0 %v2047
      %2345 = vmatpush.bf16.msra.mxu0 %v2046
      %2346 = vmatmul.bf16.gmra.mxu0 %v1219
      %v2347 = vpop.f32.mrf.mxu0
      %v2348 = vadd.f32 %v2334, %v2347
      %v2349 = vpop.f32.mrf.mxu0
      %v2350 = vadd.f32 %v2336, %v2349
      %2351 = vdwg.mxu0
      %2352 = vmatpush.bf16.msra.mxu0 %v2061
      %2353 = vmatpush.bf16.msra.mxu0 %v2060
      %2354 = vmatpush.bf16.msra.mxu0 %v2059
      %2355 = vmatpush.bf16.msra.mxu0 %v2058
      %2356 = vmatpush.bf16.msra.mxu0 %v2057
      %2357 = vmatpush.bf16.msra.mxu0 %v2056
      %2358 = vmatpush.bf16.msra.mxu0 %v2055
      %2359 = vmatpush.bf16.msra.mxu0 %v2054
      %2360 = vmatmul.bf16.gmra.mxu0 %v1220
      %v2361 = vpop.f32.mrf.mxu0
      %v2362 = vadd.f32 %v2348, %v2361
      %v2363 = vpop.f32.mrf.mxu0
      %v2364 = vadd.f32 %v2350, %v2363
      %2365 = vdwg.mxu0
      %2366 = vmatpush.bf16.msra.mxu0 %v2069
      %2367 = vmatpush.bf16.msra.mxu0 %v2068
      %2368 = vmatpush.bf16.msra.mxu0 %v2067
      %2369 = vmatpush.bf16.msra.mxu0 %v2066
      %2370 = vmatpush.bf16.msra.mxu0 %v2065
      %2371 = vmatpush.bf16.msra.mxu0 %v2064
      %2372 = vmatpush.bf16.msra.mxu0 %v2063
      %2373 = vmatpush.bf16.msra.mxu0 %v2062
      %2374 = vmatmul.bf16.gmra.mxu0 %v1221
      %v2375 = vpop.f32.mrf.mxu0
      %v2376 = vadd.f32 %v2362, %v2375
      %v2377 = vpop.f32.mrf.mxu0
      %v2378 = vadd.f32 %v2364, %v2377
      %2379 = vdwg.mxu0
      %2380 = vmatpush.bf16.msra.mxu0 %v2077
      %2381 = vmatpush.bf16.msra.mxu0 %v2076
      %2382 = vmatpush.bf16.msra.mxu0 %v2075
      %2383 = vmatpush.bf16.msra.mxu0 %v2074
      %2384 = vmatpush.bf16.msra.mxu0 %v2073
      %2385 = vmatpush.bf16.msra.mxu0 %v2072
      %2386 = vmatpush.bf16.msra.mxu0 %v2071
      %2387 = vmatpush.bf16.msra.mxu0 %v2070
      %2388 = vmatmul.bf16.gmra.mxu0 %v1222
      %v2389 = vpop.f32.mrf.mxu0
      %v2390 = vadd.f32 %v2376, %v2389
      %v2391 = vpop.f32.mrf.mxu0
      %v2392 = vadd.f32 %v2378, %v2391
      %2393 = vdwg.mxu0
      %2394 = vmatpush.bf16.msra.mxu0 %v2085
      %2395 = vmatpush.bf16.msra.mxu0 %v2084
      %2396 = vmatpush.bf16.msra.mxu0 %v2083
      %2397 = vmatpush.bf16.msra.mxu0 %v2082
      %2398 = vmatpush.bf16.msra.mxu0 %v2081
      %2399 = vmatpush.bf16.msra.mxu0 %v2080
      %2400 = vmatpush.bf16.msra.mxu0 %v2079
      %2401 = vmatpush.bf16.msra.mxu0 %v2078
      %2402 = vmatmul.bf16.gmra.mxu0 %v1223
      %v2403 = vpop.f32.mrf.mxu0
      %v2404 = vadd.f32 %v2390, %v2403
      %v2405 = vpop.f32.mrf.mxu0
      %v2406 = vadd.f32 %v2392, %v2405
      %2407 = vdwg.mxu0
      %2408 = vmatpush.bf16.msra.mxu0 %v2093
      %2409 = vmatpush.bf16.msra.mxu0 %v2092
      %2410 = vmatpush.bf16.msra.mxu0 %v2091
      %2411 = vmatpush.bf16.msra.mxu0 %v2090
      %2412 = vmatpush.bf16.msra.mxu0 %v2089
      %2413 = vmatpush.bf16.msra.mxu0 %v2088
      %2414 = vmatpush.bf16.msra.mxu0 %v2087
      %2415 = vmatpush.bf16.msra.mxu0 %v2086
      %2416 = vmatmul.bf16.gmra.mxu0 %v1224
      %v2417 = vpop.f32.mrf.mxu0
      %v2418 = vadd.f32 %v2404, %v2417
      %v2419 = vpop.f32.mrf.mxu0
      %v2420 = vadd.f32 %v2406, %v2419
      %2421 = vdwg.mxu0
      %2422 = vmatpush.bf16.msra.mxu0 %v2101
      %2423 = vmatpush.bf16.msra.mxu0 %v2100
      %2424 = vmatpush.bf16.msra.mxu0 %v2099
      %2425 = vmatpush.bf16.msra.mxu0 %v2098
      %2426 = vmatpush.bf16.msra.mxu0 %v2097
      %2427 = vmatpush.bf16.msra.mxu0 %v2096
      %2428 = vmatpush.bf16.msra.mxu0 %v2095
      %2429 = vmatpush.bf16.msra.mxu0 %v2094
      %2430 = vmatmul.bf16.gmra.mxu0 %v1225
      %v2431 = vpop.f32.mrf.mxu0
      %v2432 = vadd.f32 %v2418, %v2431
      %v2433 = vpop.f32.mrf.mxu0
      %v2434 = vadd.f32 %v2420, %v2433
      %2435 = vdwg.mxu0
      %2436 = vmatpush.bf16.msra.mxu0 %v2109
      %2437 = vmatpush.bf16.msra.mxu0 %v2108
      %2438 = vmatpush.bf16.msra.mxu0 %v2107
      %2439 = vmatpush.bf16.msra.mxu0 %v2106
      %2440 = vmatpush.bf16.msra.mxu0 %v2105
      %2441 = vmatpush.bf16.msra.mxu0 %v2104
      %2442 = vmatpush.bf16.msra.mxu0 %v2103
      %2443 = vmatpush.bf16.msra.mxu0 %v2102
      %2444 = vmatmul.bf16.gmra.mxu0 %v1226
      %v2445 = vpop.f32.mrf.mxu0
      %v2446 = vadd.f32 %v2432, %v2445
      %v2447 = vpop.f32.mrf.mxu0
      %v2448 = vadd.f32 %v2434, %v2447
      %2449 = vdwg.mxu0
      %2450 = vmatpush.bf16.msra.mxu0 %v2117
      %2451 = vmatpush.bf16.msra.mxu0 %v2116
      %2452 = vmatpush.bf16.msra.mxu0 %v2115
      %2453 = vmatpush.bf16.msra.mxu0 %v2114
      %2454 = vmatpush.bf16.msra.mxu0 %v2113
      %2455 = vmatpush.bf16.msra.mxu0 %v2112
      %2456 = vmatpush.bf16.msra.mxu0 %v2111
      %2457 = vmatpush.bf16.msra.mxu0 %v2110
      %2458 = vmatmul.bf16.gmra.mxu0 %v1227
      %v2459 = vpop.f32.mrf.mxu0
      %v2460 = vadd.f32 %v2446, %v2459
      %v2461 = vpop.f32.mrf.mxu0
      %v2462 = vadd.f32 %v2448, %v2461
      %2463 = vdwg.mxu0
      %2464 = vmatpush.bf16.msra.mxu0 %v2125
      %2465 = vmatpush.bf16.msra.mxu0 %v2124
      %2466 = vmatpush.bf16.msra.mxu0 %v2123
      %2467 = vmatpush.bf16.msra.mxu0 %v2122
      %2468 = vmatpush.bf16.msra.mxu0 %v2121
      %2469 = vmatpush.bf16.msra.mxu0 %v2120
      %2470 = vmatpush.bf16.msra.mxu0 %v2119
      %2471 = vmatpush.bf16.msra.mxu0 %v2118
      %2472 = vmatmul.bf16.gmra.mxu0 %v1228
      %v2473 = vpop.f32.mrf.mxu0
      %v2474 = vadd.f32 %v2460, %v2473
      %v2475 = vpop.f32.mrf.mxu0
      %v2476 = vadd.f32 %v2462, %v2475
      %2477 = vdwg.mxu0
      %v2478 = vadd.f32 %v723, %v2474
      %v2479 = vadd.f32 %v724, %v2476
      %v2480 = vsel %vm503, %v2478, 0.0
      %2481 = vadd.xlane.f32.xlu0 %v2480
      %v2482 = vpop.xlane.xlu0 %2481
      %v2483 = vsel %vm503, %v2479, 0.0
      %2484 = vadd.xlane.f32.xlu0 %v2483
      %v2485 = vpop.xlane.xlu0 %2484
      %v2486 = vmul.f32 %v2482, %v680
      %v2487 = vmul.f32 %v2485, %v680
      %v2488 = vsub.f32 %v2478, %v2486
      %v2489 = vsub.f32 %v2479, %v2487
      %v2490 = vmul.f32 %v2488, %v2488
      %v2491 = vmul.f32 %v2489, %v2489
      %v2492 = vsel %vm503, %v2490, 0.0
      %2493 = vadd.xlane.f32.xlu0 %v2492
      %v2494 = vpop.xlane.xlu0 %2493
      %v2495 = vsel %vm503, %v2491, 0.0
      %2496 = vadd.xlane.f32.xlu0 %v2495
      %v2497 = vpop.xlane.xlu0 %2496
      %v2498 = vmul.f32 %v2494, %v680
      %v2499 = vmul.f32 %v2497, %v680
      %v2500 = vadd.f32 %v2498, 1e-05
      %v2501 = vadd.f32 %v2499, 1e-05
      %v2502 = vrsqrt.pop %v2500
      %v2503 = vmul.f32 %v2502, %v2500
      %v2504 = vmul.f32 %v2503, %v2502
      %v2505 = vmul.f32 0.5, %v2504
      %v2506 = vsub.f32 1.5, %v2505
      %v2507 = vmul.f32 %v2502, %v2506
      %vm2508 = vweird.f32 %v2500
      %vm2509 = vweird.f32 %v2502
      %vm2510 = vmor %vm2508, %vm2509
      %v2511 = vsel %vm2510, %v2502, %v2507
      %v2512 = vrsqrt.pop %v2501
      %v2513 = vmul.f32 %v2512, %v2501
      %v2514 = vmul.f32 %v2513, %v2512
      %v2515 = vmul.f32 0.5, %v2514
      %v2516 = vsub.f32 1.5, %v2515
      %v2517 = vmul.f32 %v2512, %v2516
      %vm2518 = vweird.f32 %v2501
      %vm2519 = vweird.f32 %v2512
      %vm2520 = vmor %vm2518, %vm2519
      %v2521 = vsel %vm2520, %v2512, %v2517
      %v2522 = vmul.f32 %v2488, %v2511
      %v2523 = vmul.f32 %v2489, %v2521
      %v2524 = vperm.slane %v482, 4
      %v2525 = vmul.f32 %v2522, %v2524
      %v2526 = vmul.f32 %v2523, %v2524
      %v2527 = vperm.slane %v482, 5
      %v2528 = vadd.f32 %v2525, %v2527
      %v2529 = vadd.f32 %v2526, %v2527
      %2530 = vst.msk [vmem:[#allocation2] sm:$0xff] %vm503, %v2528
      %2531 = vst.msk [vmem:[#allocation2 + $0x8] sm:$0xff] %vm503, %v2529
      %p2532 = scmp.eq.s32.totalorder %s20, 1
      // Predicated region
      $region61: #{weather_transformer.1} parent=55 // pred_check
        %p2533 = pneg %p2532
      $region62: #{weather_transformer.1} parent=55 // pred_check_branch
        %2535 = sbr.rel (%p2533) target = $region64
      $region63: #{weather_transformer.1} parent=55 // pred_region
        %v2536 = vld [vmem:[%s1 + $0x10] sm:$0xff]
        %v2537 = vperm.slane %v2536, 5
        %v2538 = vmul.f32 %v2528, %v2537
        %v2539 = vmul.f32 %v2529, %v2537
        %v2540 = vsel %vm503, %v2538, 0.0
        %2541 = vadd.xlane.f32.xlu0 %v2540
        %v2542 = vpop.xlane.xlu0 %2541
        %v2543 = vsel %vm503, %v2539, 0.0
        %2544 = vadd.xlane.f32.xlu0 %v2543
        %v2545 = vpop.xlane.xlu0 %2544
        %v2546 = vperm.slane %v2536, 6
        %v2547 = vadd.f32 %v2542, %v2546
        %v2548 = vadd.f32 %v2545, %v2546
        %vm2549 = vcmask 7168
        %2550 = vst.msk [vmem:[%s9] sm:$0xff] %vm2549, %v2547
        %2551 = vst.msk [vmem:[%s9 + $0x8] sm:$0xff] %vm2549, %v2548
      $region64: #{weather_transformer.1} parent=55 // pred_fallthru
        _
      // Predicated region
      $region65: #{weather_transformer.1} parent=55 // pred_check
        %p2552 = pneg %p252
      $region66: #{weather_transformer.1} parent=55 // pred_check_branch
        %2554 = sbr.rel (%p2552) target = $region68
      $region67: #{weather_transformer.1} parent=55 // pred_region
        _
      $region68: #{weather_transformer.1} parent=55 // pred_fallthru
        _
      // Predicated region
      $region69: #{weather_transformer.1} parent=55 // pred_check
        %p2555 = pneg %p252
      $region70: #{weather_transformer.1} parent=55 // pred_check_branch
        %2557 = sbr.rel (%p2555) target = $region72
      $region71: #{weather_transformer.1} parent=55 // pred_region
        _
      $region72: #{weather_transformer.1} parent=55 // pred_fallthru
        _
    $region56: #{weather_transformer.1} parent=5 // pred_fallthru
      _
    %p2558 = scmp.le.s32.totalorder 2, %s15
    // Predicated region
    $region73: #{weather_transformer.1} parent=5 // pred_check
      %p2559 = pneg %p2558
    $region74: #{weather_transformer.1} parent=5 // pred_check_branch
      %2561 = sbr.rel (%p2559) target = $region76
    $region75: #{weather_transformer.1} parent=5 // pred_region
      %s2562 = ssub.s32 %s15, 2
    $region76: #{weather_transformer.1} parent=5 // pred_fallthru
      _
  $region6: #{weather_transformer.1} parent=0 // loop_footer
    %s19 = sadd.s32 1, %s15
  $region7: #{weather_transformer.1} parent=0 // loop_footer_branch
    %14 = sbr.rel target = $region3
  $region8: #{weather_transformer.1} parent=0 // loop_exit
    _

</llo_original>
